<compile_context>
chip_gen: v5e
topology: v5e:2x2
jax: 0.10.0
libtpu: 0.0.40
codegen_flags: <defaults>
</compile_context>

<pallas_src>
import functools

import jax
import jax.numpy as jnp
from jax import lax
from jax.experimental import pallas as pl
from jax.experimental.pallas import tpu as pltpu


def _largest_divisor(n, cap):
    """Largest divisor of n that is <= cap (>=1)."""
    cap = max(1, min(n, cap))
    for d in range(cap, 0, -1):
        if n % d == 0:
            return d
    return 1


def _epilogue_tile(m, cap):
    """Divisor of m <= cap, preferring multiples of 16 (bf16 sublane tile)."""
    best = None
    for d in range(max(1, min(m, cap)), 0, -1):
        if m % d == 0:
            if d % 16 == 0:
                return d
            if best is None:
                best = d
    return best or 1


def _make_conv_kernel(*, use_bias, with_stats, banded, th, Wo, stride, kH, kW):
    """Conv (in-kernel im2col) over one (image, row-band) grid step.

    Refs (in order):
      x_ref      : (Hp, Wp, Cin_p)      bf16   full padded image for this n
      w_ref      : (kH, kW, Cin_p, Cp)  bf16
      [b_ref]    : (1, Cp)              f32    only when use_bias
      y_ref      : (1, th*Wo, Cp)              conv output band (bf16 or f32)
      [stats_ref]: (1, 1, 2, Cp)        f32    per-band (sum, sum^2), when with_stats
    """

    def kernel(*refs):
        if use_bias:
            x_ref, w_ref, b_ref = refs[0], refs[1], refs[2]
            out_refs = refs[3:]
        else:
            x_ref, w_ref = refs[0], refs[1]
            b_ref = None
            out_refs = refs[2:]
        y_ref = out_refs[0]
        stats_ref = out_refs[1] if with_stats else None

        cp = y_ref.shape[-1]
        hb = pl.program_id(1)
        h_base = hb * (th * stride)  # first padded-input row used by this band

        if banded:
            # One MXU matmul per tap covering all th output rows of the band.
            band_m = th * Wo
            acc = jnp.zeros((band_m, cp), jnp.float32)
            for dh in range(kH):
                for dw in range(kW):
                    lhs = x_ref[pl.ds(h_base + dh, th), pl.ds(dw, Wo), :]
                    lhs = lhs.reshape(band_m, lhs.shape[-1])  # layout-preserving (Wo % 16 == 0)
                    acc = acc + jnp.dot(lhs, w_ref[dh, dw],
                                        preferred_element_type=jnp.float32)
            if use_bias:
                acc = acc + b_ref[...]
            y_ref[0] = acc.astype(y_ref.dtype)
            if with_stats:
                # Stats from the f32 accumulator; one partial block per grid
                # step => no cross-step accumulation => megacore-safe.
                stats_ref[0, 0, 0:1, :] = jnp.sum(acc, axis=0, keepdims=True)
                stats_ref[0, 0, 1:2, :] = jnp.sum(acc * acc, axis=0, keepdims=True)
        else:
            # Per-row fallback (stride > 1 or Wo not sublane-tile friendly).
            if with_stats:
                s1 = jnp.zeros((1, cp), jnp.float32)
                s2 = jnp.zeros((1, cp), jnp.float32)
            for r in range(th):
                acc = jnp.zeros((Wo, cp), jnp.float32)
                for dh in range(kH):
                    h_in = h_base + (r * stride + dh)
                    row = x_ref[h_in]                      # (Wp, Cin_p) bf16
                    for dw in range(kW):
                        if stride == 1:
                            lhs = row[dw:dw + Wo, :]
                        else:
                            lhs = lax.slice(
                                row, (dw, 0),
                                (dw + (Wo - 1) * stride + 1, row.shape[1]),
                                (stride, 1))
                        acc = acc + jnp.dot(lhs, w_ref[dh, dw],
                                            preferred_element_type=jnp.float32)
                if use_bias:
                    acc = acc + b_ref[...]
                y_ref[0, pl.ds(r * Wo, Wo), :] = acc.astype(y_ref.dtype)
                if with_stats:
                    s1 = s1 + jnp.sum(acc, axis=0, keepdims=True)
                    s2 = s2 + jnp.sum(acc * acc, axis=0, keepdims=True)
            if with_stats:
                stats_ref[0, 0, 0:1, :] = s1
                stats_ref[0, 0, 1:2, :] = s2

    return kernel


def _bn_leaky_kernel(y_ref, scale_ref, shift_ref, o_ref, *, slope):
    """y * scale + shift, then LeakyReLU(slope). scale/shift are (1, Cp) f32."""
    y = y_ref[...].astype(jnp.float32) * scale_ref[...] + shift_ref[...]
    o_ref[...] = jnp.where(y > 0, y, slope * y)


def cnn_block_forward(x_nchw, conv_w, conv_b, gamma, beta, *, bn_act=True,
                      stride=1, padding=1, eps=1e-5, slope=0.1,
                      band_rows_cap=8, epilogue_rows_cap=1024):
    N, Cin, H, W = x_nchw.shape
    Cout, _, kH, kW = conv_w.shape
    Ho = (H + 2 * padding - kH) // stride + 1
    Wo = (W + 2 * padding - kW) // stride + 1
    Hp, Wp = H + 2 * padding, W + 2 * padding
    M = N * Ho * Wo

    # Lane-dense channels: pad Cout to a multiple of 128 (lane width); pad Cin
    # to a multiple of 16 for a clean bf16 MXU contraction dim.
    Cp = ((Cout + 127) // 128) * 128
    Cin_p = ((Cin + 15) // 16) * 16

    th = _largest_divisor(Ho, band_rows_cap)   # output rows per band, exact
    HB = Ho // th
    band_m = th * Wo

    # Banded (single matmul per tap per band) only when the in-kernel reshape
    # is layout-preserving for bf16 ((16,128) sublane tiles).
    banded = (stride == 1) and (Wo % 16 == 0)

    # ---- layout plumbing only (no im2col blow-up): NHWC, pad, bf16 ----
    x_nhwc = jnp.transpose(x_nchw, (0, 2, 3, 1))
    x_p = jnp.pad(x_nhwc, ((0, 0), (padding, padding), (padding, padding),
                           (0, Cin_p - Cin))).astype(jnp.bfloat16)
    # OIHW -> (kH, kW, Cin_p, Cp)
    w_hwio = jnp.transpose(conv_w, (2, 3, 1, 0))
    w_hwio = jnp.pad(w_hwio, ((0, 0), (0, 0), (0, Cin_p - Cin),
                              (0, Cp - Cout))).astype(jnp.bfloat16)

    # bf16 intermediate on the BN path (halves HBM traffic of the two-pass
    # scheme); f32 when the conv output IS the module output.
    y_dtype = jnp.bfloat16 if bn_act else jnp.float32

    kern = _make_conv_kernel(use_bias=not bn_act, with_stats=bn_act,
                             banded=banded, th=th, Wo=Wo, stride=stride,
                             kH=kH, kW=kW)

    in_specs = [
        # Full padded image per n (block index constant across hb -> no re-DMA).
        pl.BlockSpec((None, Hp, Wp, Cin_p), lambda n, hb: (n, 0, 0, 0)),
        pl.BlockSpec((kH, kW, Cin_p, Cp), lambda n, hb: (0, 0, 0, 0)),
    ]
    inputs = [x_p, w_hwio]
    if not bn_act:
        b_pad = jnp.pad(conv_b.astype(jnp.float32), (0, Cp - Cout)).reshape(1, Cp)
        in_specs.append(pl.BlockSpec((1, Cp), lambda n, hb: (0, 0)))
        inputs.append(b_pad)

    # Flat-spatial output: (N, Ho*Wo, Cp) so each band writes one lane-dense
    # (band_m, Cp) slab with no in-kernel output reshape.
    y_shape = jax.ShapeDtypeStruct((N, Ho * Wo, Cp), y_dtype)
    y_spec = pl.BlockSpec((1, band_m, Cp), lambda n, hb: (n, hb, 0))
    if bn_act:
        out_shape = (y_shape, jax.ShapeDtypeStruct((N, HB, 2, Cp), jnp.float32))
        out_specs = (y_spec,
                     pl.BlockSpec((1, 1, 2, Cp), lambda n, hb: (n, hb, 0, 0)))
    else:
        out_shape = y_shape
        out_specs = y_spec

    conv_out = pl.pallas_call(
        kern,
        out_shape=out_shape,
        grid=(N, HB),
        in_specs=in_specs,
        out_specs=out_specs,
        compiler_params=pltpu.CompilerParams(
            dimension_semantics=("parallel", "parallel")),
    )(*inputs)

    if not bn_act:
        out_nhwc = conv_out.reshape(N, Ho, Wo, Cp)[..., :Cout]
    else:
        y, part_stats = conv_out
        # Tiny reduction + scale/shift precompute in plain JAX (per-channel).
        s = jnp.sum(part_stats, axis=(0, 1))                    # (2, Cp)
        mean = s[0] / M
        # TODO(synk): E[y^2]-E[y]^2 in f32 can cancel for production-size M;
        # switch to a Welford / mean-subtracted second pass for huge layers.
        var = jnp.maximum(s[1] / M - mean * mean, 0.0)          # biased var
        gamma_p = jnp.pad(gamma.astype(jnp.float32), (0, Cp - Cout))
        beta_p = jnp.pad(beta.astype(jnp.float32), (0, Cp - Cout))
        scale = gamma_p * lax.rsqrt(var + eps)
        shift = beta_p - mean * scale

        tm2 = _epilogue_tile(M, epilogue_rows_cap)   # large BW-bound tile
        y_flat = y.reshape(M, Cp)                    # contiguous, layout no-op
        out_flat = pl.pallas_call(
            functools.partial(_bn_leaky_kernel, slope=slope),
            out_shape=jax.ShapeDtypeStruct((M, Cp), jnp.float32),
            grid=(M // tm2,),
            in_specs=[pl.BlockSpec((tm2, Cp), lambda i: (i, 0)),
                      pl.BlockSpec((1, Cp), lambda i: (0, 0)),
                      pl.BlockSpec((1, Cp), lambda i: (0, 0))],
            out_specs=pl.BlockSpec((tm2, Cp), lambda i: (i, 0)),
            compiler_params=pltpu.CompilerParams(
                dimension_semantics=("parallel",)),
        )(y_flat, scale.reshape(1, Cp), shift.reshape(1, Cp))
        out_nhwc = out_flat.reshape(N, Ho, Wo, Cp)[..., :Cout]

    # Back to PyTorch NCHW to match the module's interface.
    # TODO(synk): for a chain of CNNBlocks keep NHWC end-to-end to skip this pass.
    return jnp.transpose(out_nhwc, (0, 3, 1, 2))


def _ref_forward(x, w, b, gamma, beta, *, bn_act, eps=1e-5, slope=0.1):
    """Pure-JAX reference mimicking the PyTorch module (training-mode BN)."""
    y = jax.lax.conv_general_dilated(
        x, w, window_strides=(1, 1), padding=((1, 1), (1, 1)),
        dimension_numbers=("NCHW", "OIHW", "NCHW"),
        precision=jax.lax.Precision.HIGHEST)
    if not bn_act:
        return y + b[None, :, None, None]
    mean = y.mean(axis=(0, 2, 3), keepdims=True)
    var = y.var(axis=(0, 2, 3), keepdims=True)      # biased, like torch BN
    yn = (y - mean) / jnp.sqrt(var + eps)
    yn = yn * gamma[None, :, None, None] + beta[None, :, None, None]
    return jnp.where(yn > 0, yn, slope * yn)


if __name__ == "__main__":
    key = jax.random.PRNGKey(0)
    k1, k2, k3, k4, k5 = jax.random.split(key, 5)

    N, Cin, H, W = 2, 4, 16, 16
    Cout, kH, kW = 8, 3, 3        # Conv2d(4, 8, kernel_size=3, stride=1, padding=1)

    x = jax.random.normal(k1, (N, Cin, H, W), jnp.float32)
    conv_w = 0.1 * jax.random.normal(k2, (Cout, Cin, kH, kW), jnp.float32)
    conv_b = 0.1 * jax.random.normal(k3, (Cout,), jnp.float32)
    gamma = 1.0 + 0.1 * jax.random.normal(k4, (Cout,), jnp.float32)
    beta = 0.05 * jax.random.normal(k5, (Cout,), jnp.float32)

    # bn_act=True path (conv -> batchnorm -> leaky relu)
    out_bn = cnn_block_forward(x, conv_w, conv_b, gamma, beta, bn_act=True)
    out_bn = jax.block_until_ready(out_bn)
    ref_bn = _ref_forward(x, conv_w, conv_b, gamma, beta, bn_act=True)

    # bn_act=False path (conv with bias only)
    out_conv = cnn_block_forward(x, conv_w, conv_b, gamma, beta, bn_act=False)
    out_conv = jax.block_until_ready(out_conv)
    ref_conv = _ref_forward(x, conv_w, conv_b, gamma, beta, bn_act=False)

    assert out_bn.shape == (N, Cout, H, W)
    assert out_conv.shape == (N, Cout, H, W)
    assert jnp.allclose(out_bn, ref_bn, atol=2e-2, rtol=2e-2)
    assert jnp.allclose(out_conv, ref_conv, atol=2e-2, rtol=2e-2)
    print("KERNEL_OK")
</pallas_src>

<mosaic_0001>
module attributes {stable_mosaic.version = 11 : i64} {
  func.func @kernel(%arg0: i32, %arg1: i32, %arg2: memref<1x18x18x16xbf16, #tpu.memory_space<vmem>>, %arg3: memref<3x3x16x128xbf16, #tpu.memory_space<vmem>>, %arg4: memref<1x128x128xbf16, #tpu.memory_space<vmem>>, %arg5: memref<1x1x2x128xf32, #tpu.memory_space<vmem>>) attributes {dimension_semantics = [#tpu.dimension_semantics<parallel>, #tpu.dimension_semantics<parallel>], iteration_bounds = array<i64: 2, 2>, scalar_prefetch = 0 : i64, scratch_operands = 0 : i64, tpu.core_type = #tpu.core_type<tc>, window_params = [{transform_indices = @transform_0, window_bounds = array<i64: 1, 18, 18, 16>}, {pipeline_mode = #tpu.pipeline_mode<synchronous>, transform_indices = @transform_1, window_bounds = array<i64: 3, 3, 16, 128>}, {transform_indices = @transform_2, window_bounds = array<i64: 1, 128, 128>}, {transform_indices = @transform_3, window_bounds = array<i64: 1, 1, 2, 128>}]} {
    %c8_i32 = arith.constant 8 : i32
    %0 = arith.muli %arg1, %c8_i32 : i32
    %cst = arith.constant 0.000000e+00 : f32
    %1 = vector.broadcast %cst : f32 to vector<128x128xf32>
    %c0_i32 = arith.constant 0 : i32
    %2 = arith.addi %0, %c0_i32 : i32
    %c0 = arith.constant 0 : index
    %3 = arith.index_cast %2 : i32 to index
    %c0_0 = arith.constant 0 : index
    %c0_1 = arith.constant 0 : index
    %4 = vector.load %arg2[%c0, %3, %c0_0, %c0_1] : memref<1x18x18x16xbf16, #tpu.memory_space<vmem>>, vector<1x8x16x16xbf16>
    %5 = vector.shape_cast %4 : vector<1x8x16x16xbf16> to vector<8x16x16xbf16>
    %6 = vector.shape_cast %5 : vector<8x16x16xbf16> to vector<128x16xbf16>
    %c0_2 = arith.constant 0 : index
    %c0_3 = arith.constant 0 : index
    %c0_4 = arith.constant 0 : index
    %c0_5 = arith.constant 0 : index
    %7 = vector.load %arg3[%c0_2, %c0_3, %c0_4, %c0_5] : memref<3x3x16x128xbf16, #tpu.memory_space<vmem>>, vector<1x1x16x128xbf16>
    %8 = vector.shape_cast %7 : vector<1x1x16x128xbf16> to vector<16x128xbf16>
    %cst_6 = arith.constant dense<0.000000e+00> : vector<128x128xf32>
    %9 = tpu.matmul %6, %8, %cst_6 {dimension_numbers = #tpu.dot_dimension_numbers<[1], [0], [0], [1], [0, 0, 1, 1], [], []>} : vector<128x16xbf16>, vector<16x128xbf16>, vector<128x128xf32> -> vector<128x128xf32>
    %10 = arith.addf %1, %9 : vector<128x128xf32>
    %c0_i32_7 = arith.constant 0 : i32
    %11 = arith.addi %0, %c0_i32_7 : i32
    %c0_8 = arith.constant 0 : index
    %12 = arith.index_cast %11 : i32 to index
    %c1 = arith.constant 1 : index
    %c0_9 = arith.constant 0 : index
    %13 = vector.load %arg2[%c0_8, %12, %c1, %c0_9] : memref<1x18x18x16xbf16, #tpu.memory_space<vmem>>, vector<1x8x16x16xbf16>
    %14 = vector.shape_cast %13 : vector<1x8x16x16xbf16> to vector<8x16x16xbf16>
    %15 = vector.shape_cast %14 : vector<8x16x16xbf16> to vector<128x16xbf16>
    %c0_10 = arith.constant 0 : index
    %c1_11 = arith.constant 1 : index
    %c0_12 = arith.constant 0 : index
    %c0_13 = arith.constant 0 : index
    %16 = vector.load %arg3[%c0_10, %c1_11, %c0_12, %c0_13] : memref<3x3x16x128xbf16, #tpu.memory_space<vmem>>, vector<1x1x16x128xbf16>
    %17 = vector.shape_cast %16 : vector<1x1x16x128xbf16> to vector<16x128xbf16>
    %cst_14 = arith.constant dense<0.000000e+00> : vector<128x128xf32>
    %18 = tpu.matmul %15, %17, %cst_14 {dimension_numbers = #tpu.dot_dimension_numbers<[1], [0], [0], [1], [0, 0, 1, 1], [], []>} : vector<128x16xbf16>, vector<16x128xbf16>, vector<128x128xf32> -> vector<128x128xf32>
    %19 = arith.addf %10, %18 : vector<128x128xf32>
    %c0_i32_15 = arith.constant 0 : i32
    %20 = arith.addi %0, %c0_i32_15 : i32
    %c0_16 = arith.constant 0 : index
    %21 = arith.index_cast %20 : i32 to index
    %c2 = arith.constant 2 : index
    %c0_17 = arith.constant 0 : index
    %22 = vector.load %arg2[%c0_16, %21, %c2, %c0_17] : memref<1x18x18x16xbf16, #tpu.memory_space<vmem>>, vector<1x8x16x16xbf16>
    %23 = vector.shape_cast %22 : vector<1x8x16x16xbf16> to vector<8x16x16xbf16>
    %24 = vector.shape_cast %23 : vector<8x16x16xbf16> to vector<128x16xbf16>
    %c0_18 = arith.constant 0 : index
    %c2_19 = arith.constant 2 : index
    %c0_20 = arith.constant 0 : index
    %c0_21 = arith.constant 0 : index
    %25 = vector.load %arg3[%c0_18, %c2_19, %c0_20, %c0_21] : memref<3x3x16x128xbf16, #tpu.memory_space<vmem>>, vector<1x1x16x128xbf16>
    %26 = vector.shape_cast %25 : vector<1x1x16x128xbf16> to vector<16x128xbf16>
    %cst_22 = arith.constant dense<0.000000e+00> : vector<128x128xf32>
    %27 = tpu.matmul %24, %26, %cst_22 {dimension_numbers = #tpu.dot_dimension_numbers<[1], [0], [0], [1], [0, 0, 1, 1], [], []>} : vector<128x16xbf16>, vector<16x128xbf16>, vector<128x128xf32> -> vector<128x128xf32>
    %28 = arith.addf %19, %27 : vector<128x128xf32>
    %c1_i32 = arith.constant 1 : i32
    %29 = arith.addi %0, %c1_i32 : i32
    %c0_23 = arith.constant 0 : index
    %30 = arith.index_cast %29 : i32 to index
    %c0_24 = arith.constant 0 : index
    %c0_25 = arith.constant 0 : index
    %31 = vector.load %arg2[%c0_23, %30, %c0_24, %c0_25] : memref<1x18x18x16xbf16, #tpu.memory_space<vmem>>, vector<1x8x16x16xbf16>
    %32 = vector.shape_cast %31 : vector<1x8x16x16xbf16> to vector<8x16x16xbf16>
    %33 = vector.shape_cast %32 : vector<8x16x16xbf16> to vector<128x16xbf16>
    %c1_26 = arith.constant 1 : index
    %c0_27 = arith.constant 0 : index
    %c0_28 = arith.constant 0 : index
    %c0_29 = arith.constant 0 : index
    %34 = vector.load %arg3[%c1_26, %c0_27, %c0_28, %c0_29] : memref<3x3x16x128xbf16, #tpu.memory_space<vmem>>, vector<1x1x16x128xbf16>
    %35 = vector.shape_cast %34 : vector<1x1x16x128xbf16> to vector<16x128xbf16>
    %cst_30 = arith.constant dense<0.000000e+00> : vector<128x128xf32>
    %36 = tpu.matmul %33, %35, %cst_30 {dimension_numbers = #tpu.dot_dimension_numbers<[1], [0], [0], [1], [0, 0, 1, 1], [], []>} : vector<128x16xbf16>, vector<16x128xbf16>, vector<128x128xf32> -> vector<128x128xf32>
    %37 = arith.addf %28, %36 : vector<128x128xf32>
    %c1_i32_31 = arith.constant 1 : i32
    %38 = arith.addi %0, %c1_i32_31 : i32
    %c0_32 = arith.constant 0 : index
    %39 = arith.index_cast %38 : i32 to index
    %c1_33 = arith.constant 1 : index
    %c0_34 = arith.constant 0 : index
    %40 = vector.load %arg2[%c0_32, %39, %c1_33, %c0_34] : memref<1x18x18x16xbf16, #tpu.memory_space<vmem>>, vector<1x8x16x16xbf16>
    %41 = vector.shape_cast %40 : vector<1x8x16x16xbf16> to vector<8x16x16xbf16>
    %42 = vector.shape_cast %41 : vector<8x16x16xbf16> to vector<128x16xbf16>
    %c1_35 = arith.constant 1 : index
    %c1_36 = arith.constant 1 : index
    %c0_37 = arith.constant 0 : index
    %c0_38 = arith.constant 0 : index
    %43 = vector.load %arg3[%c1_35, %c1_36, %c0_37, %c0_38] : memref<3x3x16x128xbf16, #tpu.memory_space<vmem>>, vector<1x1x16x128xbf16>
    %44 = vector.shape_cast %43 : vector<1x1x16x128xbf16> to vector<16x128xbf16>
    %cst_39 = arith.constant dense<0.000000e+00> : vector<128x128xf32>
    %45 = tpu.matmul %42, %44, %cst_39 {dimension_numbers = #tpu.dot_dimension_numbers<[1], [0], [0], [1], [0, 0, 1, 1], [], []>} : vector<128x16xbf16>, vector<16x128xbf16>, vector<128x128xf32> -> vector<128x128xf32>
    %46 = arith.addf %37, %45 : vector<128x128xf32>
    %c1_i32_40 = arith.constant 1 : i32
    %47 = arith.addi %0, %c1_i32_40 : i32
    %c0_41 = arith.constant 0 : index
    %48 = arith.index_cast %47 : i32 to index
    %c2_42 = arith.constant 2 : index
    %c0_43 = arith.constant 0 : index
    %49 = vector.load %arg2[%c0_41, %48, %c2_42, %c0_43] : memref<1x18x18x16xbf16, #tpu.memory_space<vmem>>, vector<1x8x16x16xbf16>
    %50 = vector.shape_cast %49 : vector<1x8x16x16xbf16> to vector<8x16x16xbf16>
    %51 = vector.shape_cast %50 : vector<8x16x16xbf16> to vector<128x16xbf16>
    %c1_44 = arith.constant 1 : index
    %c2_45 = arith.constant 2 : index
    %c0_46 = arith.constant 0 : index
    %c0_47 = arith.constant 0 : index
    %52 = vector.load %arg3[%c1_44, %c2_45, %c0_46, %c0_47] : memref<3x3x16x128xbf16, #tpu.memory_space<vmem>>, vector<1x1x16x128xbf16>
    %53 = vector.shape_cast %52 : vector<1x1x16x128xbf16> to vector<16x128xbf16>
    %cst_48 = arith.constant dense<0.000000e+00> : vector<128x128xf32>
    %54 = tpu.matmul %51, %53, %cst_48 {dimension_numbers = #tpu.dot_dimension_numbers<[1], [0], [0], [1], [0, 0, 1, 1], [], []>} : vector<128x16xbf16>, vector<16x128xbf16>, vector<128x128xf32> -> vector<128x128xf32>
    %55 = arith.addf %46, %54 : vector<128x128xf32>
    %c2_i32 = arith.constant 2 : i32
    %56 = arith.addi %0, %c2_i32 : i32
    %c0_49 = arith.constant 0 : index
    %57 = arith.index_cast %56 : i32 to index
    %c0_50 = arith.constant 0 : index
    %c0_51 = arith.constant 0 : index
    %58 = vector.load %arg2[%c0_49, %57, %c0_50, %c0_51] : memref<1x18x18x16xbf16, #tpu.memory_space<vmem>>, vector<1x8x16x16xbf16>
    %59 = vector.shape_cast %58 : vector<1x8x16x16xbf16> to vector<8x16x16xbf16>
    %60 = vector.shape_cast %59 : vector<8x16x16xbf16> to vector<128x16xbf16>
    %c2_52 = arith.constant 2 : index
    %c0_53 = arith.constant 0 : index
    %c0_54 = arith.constant 0 : index
    %c0_55 = arith.constant 0 : index
    %61 = vector.load %arg3[%c2_52, %c0_53, %c0_54, %c0_55] : memref<3x3x16x128xbf16, #tpu.memory_space<vmem>>, vector<1x1x16x128xbf16>
    %62 = vector.shape_cast %61 : vector<1x1x16x128xbf16> to vector<16x128xbf16>
    %cst_56 = arith.constant dense<0.000000e+00> : vector<128x128xf32>
    %63 = tpu.matmul %60, %62, %cst_56 {dimension_numbers = #tpu.dot_dimension_numbers<[1], [0], [0], [1], [0, 0, 1, 1], [], []>} : vector<128x16xbf16>, vector<16x128xbf16>, vector<128x128xf32> -> vector<128x128xf32>
    %64 = arith.addf %55, %63 : vector<128x128xf32>
    %c2_i32_57 = arith.constant 2 : i32
    %65 = arith.addi %0, %c2_i32_57 : i32
    %c0_58 = arith.constant 0 : index
    %66 = arith.index_cast %65 : i32 to index
    %c1_59 = arith.constant 1 : index
    %c0_60 = arith.constant 0 : index
    %67 = vector.load %arg2[%c0_58, %66, %c1_59, %c0_60] : memref<1x18x18x16xbf16, #tpu.memory_space<vmem>>, vector<1x8x16x16xbf16>
    %68 = vector.shape_cast %67 : vector<1x8x16x16xbf16> to vector<8x16x16xbf16>
    %69 = vector.shape_cast %68 : vector<8x16x16xbf16> to vector<128x16xbf16>
    %c2_61 = arith.constant 2 : index
    %c1_62 = arith.constant 1 : index
    %c0_63 = arith.constant 0 : index
    %c0_64 = arith.constant 0 : index
    %70 = vector.load %arg3[%c2_61, %c1_62, %c0_63, %c0_64] : memref<3x3x16x128xbf16, #tpu.memory_space<vmem>>, vector<1x1x16x128xbf16>
    %71 = vector.shape_cast %70 : vector<1x1x16x128xbf16> to vector<16x128xbf16>
    %cst_65 = arith.constant dense<0.000000e+00> : vector<128x128xf32>
    %72 = tpu.matmul %69, %71, %cst_65 {dimension_numbers = #tpu.dot_dimension_numbers<[1], [0], [0], [1], [0, 0, 1, 1], [], []>} : vector<128x16xbf16>, vector<16x128xbf16>, vector<128x128xf32> -> vector<128x128xf32>
    %73 = arith.addf %64, %72 : vector<128x128xf32>
    %c2_i32_66 = arith.constant 2 : i32
    %74 = arith.addi %0, %c2_i32_66 : i32
    %c0_67 = arith.constant 0 : index
    %75 = arith.index_cast %74 : i32 to index
    %c2_68 = arith.constant 2 : index
    %c0_69 = arith.constant 0 : index
    %76 = vector.load %arg2[%c0_67, %75, %c2_68, %c0_69] : memref<1x18x18x16xbf16, #tpu.memory_space<vmem>>, vector<1x8x16x16xbf16>
    %77 = vector.shape_cast %76 : vector<1x8x16x16xbf16> to vector<8x16x16xbf16>
    %78 = vector.shape_cast %77 : vector<8x16x16xbf16> to vector<128x16xbf16>
    %c2_70 = arith.constant 2 : index
    %c2_71 = arith.constant 2 : index
    %c0_72 = arith.constant 0 : index
    %c0_73 = arith.constant 0 : index
    %79 = vector.load %arg3[%c2_70, %c2_71, %c0_72, %c0_73] : memref<3x3x16x128xbf16, #tpu.memory_space<vmem>>, vector<1x1x16x128xbf16>
    %80 = vector.shape_cast %79 : vector<1x1x16x128xbf16> to vector<16x128xbf16>
    %cst_74 = arith.constant dense<0.000000e+00> : vector<128x128xf32>
    %81 = tpu.matmul %78, %80, %cst_74 {dimension_numbers = #tpu.dot_dimension_numbers<[1], [0], [0], [1], [0, 0, 1, 1], [], []>} : vector<128x16xbf16>, vector<16x128xbf16>, vector<128x128xf32> -> vector<128x128xf32>
    %82 = arith.addf %73, %81 : vector<128x128xf32>
    %83 = arith.truncf %82 : vector<128x128xf32> to vector<128x128xbf16>
    %c0_75 = arith.constant 0 : index
    %c0_76 = arith.constant 0 : index
    %c0_77 = arith.constant 0 : index
    %84 = vector.load %arg4[%c0_75, %c0_76, %c0_77] : memref<1x128x128xbf16, #tpu.memory_space<vmem>>, vector<1x128x128xbf16>
    %85 = vector.shape_cast %84 : vector<1x128x128xbf16> to vector<128x128xbf16>
    %86 = vector.shape_cast %83 : vector<128x128xbf16> to vector<1x128x128xbf16>
    tpu.vector_store %arg4[%c0_75, %c0_76, %c0_77], %86 {strides = array<i32>} : memref<1x128x128xbf16, #tpu.memory_space<vmem>>, vector<1x128x128xbf16>,
    %cst_78 = arith.constant dense<0.000000e+00> : vector<128xf32>
    %87 = vector.multi_reduction <add>, %82, %cst_78 [0] : vector<128x128xf32> to vector<128xf32>
    %88 = vector.shape_cast %87 : vector<128xf32> to vector<1x128xf32>
    %c0_79 = arith.constant 0 : index
    %c0_80 = arith.constant 0 : index
    %c0_81 = arith.constant 0 : index
    %c0_82 = arith.constant 0 : index
    %89 = vector.load %arg5[%c0_79, %c0_80, %c0_81, %c0_82] : memref<1x1x2x128xf32, #tpu.memory_space<vmem>>, vector<1x1x1x128xf32>
    %90 = vector.shape_cast %89 : vector<1x1x1x128xf32> to vector<1x128xf32>
    %91 = vector.shape_cast %88 : vector<1x128xf32> to vector<1x1x1x128xf32>
    tpu.vector_store %arg5[%c0_79, %c0_80, %c0_81, %c0_82], %91 {strides = array<i32>} : memref<1x1x2x128xf32, #tpu.memory_space<vmem>>, vector<1x1x1x128xf32>,
    %92 = arith.mulf %82, %82 : vector<128x128xf32>
    %cst_83 = arith.constant dense<0.000000e+00> : vector<128xf32>
    %93 = vector.multi_reduction <add>, %92, %cst_83 [0] : vector<128x128xf32> to vector<128xf32>
    %94 = vector.shape_cast %93 : vector<128xf32> to vector<1x128xf32>
    %c0_84 = arith.constant 0 : index
    %c0_85 = arith.constant 0 : index
    %c1_86 = arith.constant 1 : index
    %c0_87 = arith.constant 0 : index
    %95 = vector.load %arg5[%c0_84, %c0_85, %c1_86, %c0_87] : memref<1x1x2x128xf32, #tpu.memory_space<vmem>>, vector<1x1x1x128xf32>
    %96 = vector.shape_cast %95 : vector<1x1x1x128xf32> to vector<1x128xf32>
    %97 = vector.shape_cast %94 : vector<1x128xf32> to vector<1x1x1x128xf32>
    tpu.vector_store %arg5[%c0_84, %c0_85, %c1_86, %c0_87], %97 {strides = array<i32>} : memref<1x1x2x128xf32, #tpu.memory_space<vmem>>, vector<1x1x1x128xf32>,
    return
  }
  func.func @transform_0(%arg0: i32, %arg1: i32) -> (i32, i32, i32, i32) {
    %c0_i32 = arith.constant 0 : i32
    %c0_i32_0 = arith.constant 0 : i32
    %c0_i32_1 = arith.constant 0 : i32
    %c0_i32_2 = arith.constant 0 : i32
    return %arg0, %c0_i32, %c0_i32_0, %c0_i32_1 : i32, i32, i32, i32
  }
  func.func @transform_1(%arg0: i32, %arg1: i32) -> (i32, i32, i32, i32) {
    %c0_i32 = arith.constant 0 : i32
    %c0_i32_0 = arith.constant 0 : i32
    %c0_i32_1 = arith.constant 0 : i32
    %c0_i32_2 = arith.constant 0 : i32
    %c0_i32_3 = arith.constant 0 : i32
    return %c0_i32, %c0_i32_0, %c0_i32_1, %c0_i32_2 : i32, i32, i32, i32
  }
  func.func @transform_2(%arg0: i32, %arg1: i32) -> (i32, i32, i32) {
    %c0_i32 = arith.constant 0 : i32
    %c0_i32_0 = arith.constant 0 : i32
    return %arg0, %arg1, %c0_i32 : i32, i32, i32
  }
  func.func @transform_3(%arg0: i32, %arg1: i32) -> (i32, i32, i32, i32) {
    %c0_i32 = arith.constant 0 : i32
    %c0_i32_0 = arith.constant 0 : i32
    %c0_i32_1 = arith.constant 0 : i32
    return %arg0, %arg1, %c0_i32, %c0_i32_0 : i32, i32, i32, i32
  }
}

</mosaic_0001>

<llo_original>
// kernel: tpu_custom_call.1
$region0: #{tpu_custom_call.1}
  #allocation0 [shape = 'u32[]', space=smem, size = 0x4, offset = 0x4, fixed_abs, tag = 'smem constant byte address 0x4 - core index']
  #allocation1 [shape = 'u32[72,128]{1,0:T(1,128)}', space=vmem, size = 0x9000, scoped, tag = 'internal scratch']
  %s0 = inlined_call_operand.vmem [shape: bf16[2,18,18,16], index: 0, kind: input, shape index: {}]
  %s1 = inlined_call_operand.vmem [shape: bf16[3,3,16,128], index: 1, kind: input, shape index: {}]
  %s2 = inlined_call_operand.hbm [shape: bf16[2,256,128], index: 2, kind: output, shape index: {0}]
  %s3 = inlined_call_operand.hbm [shape: f32[2,2,2,128], index: 3, kind: output, shape index: {1}]
  %4 = xla_tuple %s2, %s3
  %s5 = sld [smem:[#allocation0]]
  $region49: #{tpu_custom_call.1} parent=0
    _
  %s7 = ssub.s32 1, %s5
  %s8 = scalar_select 0, %s7, %s5
  $region1: #{tpu_custom_call.1} parent=0
    #allocation2 [shape = 'u8[65536]{0}', space=vmem, size = 0x10000, scoped, tag = 'output window, operand 0']
    #allocation3 [shape = 's32[2]{0}', space=sflag, size = 0x8, scoped, tag = 'scoped memory for tpu_custom_call.1']
    #allocation4 [shape = 'u8[2048]{0}', space=vmem, size = 0x800, scoped, tag = 'output window, operand 1']
    #allocation5 [shape = 's32[2]{0}', space=sflag, size = 0x8, scoped, tag = 'scoped memory for tpu_custom_call.1']
    %9 = vsyncpa [#allocation3], 0
    %s10 = scalar_lea.sflag [#allocation3], 1
    %11 = vsyncpa %s10, 0
    %12 = vsyncpa [#allocation5], 0
    %s13 = scalar_lea.sflag [#allocation5], 1
    %14 = vsyncpa %s13, 0
    loop: start=0, step=1, limit=6
    $region2: #{tpu_custom_call.1} parent=1 // loop_pre_header
      _
    $region3: #{tpu_custom_call.1} parent=1 // loop_header
      %s16 = sphi 0, %s20
      %p17 = scmp.ge.s32.totalorder %s16, 6
      %s23 = sphi 0, %s35
      %s24 = sphi 0, %s31
      %s25 = sphi 0, %s23
      %s26 = sphi 0, %s24
      %s27 = sphi 0, %s25
      %s28 = sphi 0, %s26
      %s38 = sphi 0, %s40
      %s41 = sphi 0, %s38
      %s42 = sphi 0, %s41
      %s58 = sphi 0, %s42
      %s62 = sphi 0, %s62
      %s64 = sphi 0, %s62
      %s65 = sphi 0, %s64
      %s79 = sphi 0, %s65
      %s87 = sphi 0, %s89
      %s90 = sphi 0, %s87
      %s91 = sphi 0, %s90
      %s107 = sphi 0, %s91
      %s115 = sphi 0, %s117
      %s118 = sphi 0, %s115
      %s119 = sphi 0, %s118
      %s135 = sphi 0, %s119
    $region4: #{tpu_custom_call.1} parent=1 // loop_header_branch
      %19 = sbr.rel (%p17) target = $region8
    $region5: #{tpu_custom_call.1} parent=1 // loop_body
      %s21 = ssub.s32 %s16, 1
      %s22 = ssub.s32 %s16, 2
      %s29 = sadd.s32 1, %s24
      %p30 = scmp.ge.s32.totalorder %s29, 2
      %s31 = scalar_select %p30, 0, %s29
      %s32 = sadd.s32 1, %s23
      %s33 = scalar_select %p30, %s32, %s23
      %p34 = scmp.ge.s32.totalorder %s33, 2
      %s35 = scalar_select %p34, 0, %s33
      %s36 = ssub.s32 %s23, %s35
      %p37 = scmp.eq.s32.totalorder %s36, 0
      %s39 = sadd.s32 %s38, 1
      %s40 = scalar_select %p37, %s38, %s39
      %p43 = pneg %p37
      %p44 = scmp.eq.s32.totalorder %s16, 3
      %p45 = por %p43, %p44
      %p46 = scmp.ne.s32.totalorder %s38, %s41
      %p47 = scmp.eq.s32.totalorder %s16, 0
      %p48 = por %p46, %p47
      %p49 = scmp.ne.s32.totalorder %s38, %s41
      %p50 = scmp.eq.s32.totalorder %s21, 3
      %p51 = por %p49, %p50
      %p52 = scmp.ne.s32.totalorder %s41, %s42
      %p53 = scmp.eq.s32.totalorder %s21, 0
      %p54 = por %p52, %p53
      %p55 = scmp.ne.s32.totalorder %s41, %s42
      %p56 = scmp.eq.s32.totalorder %s22, 3
      %p57 = por %p55, %p56
      %p59 = scmp.ne.s32.totalorder %s42, %s58
      %p60 = scmp.eq.s32.totalorder %s22, 0
      %p61 = por %p59, %p60
      %s63 = sadd.s32 %s62, 1
      %p66 = scmp.eq.s32.totalorder %s16, 3
      %p67 = scmp.ne.s32.totalorder %s62, %s64
      %p68 = scmp.eq.s32.totalorder %s16, 0
      %p69 = por %p67, %p68
      %p70 = scmp.ne.s32.totalorder %s62, %s64
      %p71 = scmp.eq.s32.totalorder %s21, 3
      %p72 = por %p70, %p71
      %p73 = scmp.ne.s32.totalorder %s64, %s65
      %p74 = scmp.eq.s32.totalorder %s21, 0
      %p75 = por %p73, %p74
      %p76 = scmp.ne.s32.totalorder %s64, %s65
      %p77 = scmp.eq.s32.totalorder %s22, 3
      %p78 = por %p76, %p77
      %p80 = scmp.ne.s32.totalorder %s65, %s79
      %p81 = scmp.eq.s32.totalorder %s22, 0
      %p82 = por %p80, %p81
      %s83 = ssub.s32 %s23, %s35
      %s84 = ssub.s32 %s24, %s31
      %s85 = sor.u32 %s83, %s84
      %p86 = scmp.eq.s32.totalorder %s85, 0
      %s88 = sadd.s32 %s87, 1
      %s89 = scalar_select %p86, %s87, %s88
      %p92 = pneg %p86
      %p93 = scmp.eq.s32.totalorder %s16, 3
      %p94 = por %p92, %p93
      %p95 = scmp.ne.s32.totalorder %s87, %s90
      %p96 = scmp.eq.s32.totalorder %s16, 0
      %p97 = por %p95, %p96
      %p98 = scmp.ne.s32.totalorder %s87, %s90
      %p99 = scmp.eq.s32.totalorder %s21, 3
      %p100 = por %p98, %p99
      %p101 = scmp.ne.s32.totalorder %s90, %s91
      %p102 = scmp.eq.s32.totalorder %s21, 0
      %p103 = por %p101, %p102
      %p104 = scmp.ne.s32.totalorder %s90, %s91
      %p105 = scmp.eq.s32.totalorder %s22, 3
      %p106 = por %p104, %p105
      %p108 = scmp.ne.s32.totalorder %s91, %s107
      %p109 = scmp.eq.s32.totalorder %s22, 0
      %p110 = por %p108, %p109
      %s111 = ssub.s32 %s23, %s35
      %s112 = ssub.s32 %s24, %s31
      %s113 = sor.u32 %s111, %s112
      %p114 = scmp.eq.s32.totalorder %s113, 0
      %s116 = sadd.s32 %s115, 1
      %s117 = scalar_select %p114, %s115, %s116
      %p120 = pneg %p114
      %p121 = scmp.eq.s32.totalorder %s16, 3
      %p122 = por %p120, %p121
      %p123 = scmp.ne.s32.totalorder %s115, %s118
      %p124 = scmp.eq.s32.totalorder %s16, 0
      %p125 = por %p123, %p124
      %p126 = scmp.ne.s32.totalorder %s115, %s118
      %p127 = scmp.eq.s32.totalorder %s21, 3
      %p128 = por %p126, %p127
      %p129 = scmp.ne.s32.totalorder %s118, %s119
      %p130 = scmp.eq.s32.totalorder %s21, 0
      %p131 = por %p129, %p130
      %p132 = scmp.ne.s32.totalorder %s118, %s119
      %p133 = scmp.eq.s32.totalorder %s22, 3
      %p134 = por %p132, %p133
      %p136 = scmp.ne.s32.totalorder %s119, %s135
      %p137 = scmp.eq.s32.totalorder %s22, 0
      %p138 = por %p136, %p137
      %p139 = scmp.le.s32.totalorder 1, %s16
      %p140 = scmp.lt.s32.totalorder %s16, 5
      %p141 = pnand %p139, %p140
      %p142 = pneg %p141
      // Predicated region
      $region9: #{tpu_custom_call.1} parent=5 // pred_check
        _
      $region10: #{tpu_custom_call.1} parent=5 // pred_check_branch
        %144 = sbr.rel (%p141) target = $region12
      $region11: #{tpu_custom_call.1} parent=5 // pred_region
        %s145 = ssub.s32 %s16, 1
        // Predicated region
        $region13: #{tpu_custom_call.1} parent=11 // pred_check
          %p146 = pneg %p75
        $region14: #{tpu_custom_call.1} parent=11 // pred_check_branch
          %148 = sbr.rel (%p146) target = $region16
        $region15: #{tpu_custom_call.1} parent=11 // pred_region
          _
        $region16: #{tpu_custom_call.1} parent=11 // pred_fallthru
          _
      $region12: #{tpu_custom_call.1} parent=5 // pred_fallthru
        _
      %p149 = scmp.lt.s32.totalorder %s16, 4
      // Predicated region
      $region17: #{tpu_custom_call.1} parent=5 // pred_check
        %p150 = pneg %p149
      $region18: #{tpu_custom_call.1} parent=5 // pred_check_branch
        %152 = sbr.rel (%p150) target = $region20
      $region19: #{tpu_custom_call.1} parent=5 // pred_region
        // Predicated region
        $region21: #{tpu_custom_call.1} parent=19 // pred_check
          %p153 = pneg %p48
        $region22: #{tpu_custom_call.1} parent=19 // pred_check_branch
          %155 = sbr.rel (%p153) target = $region24
        $region23: #{tpu_custom_call.1} parent=19 // pred_region
          %p156 = scmp.lt.s32.totalorder %s23, 1
          %s157 = scalar_select %p156, %s23, 1
          %s158 = smul.addr %s157, 54
          %s159 = smul.addr %s158, 4
          %s160 = scalar_lea.vmem %s0, %s159
        $region24: #{tpu_custom_call.1} parent=19 // pred_fallthru
          _
      $region20: #{tpu_custom_call.1} parent=5 // pred_fallthru
        _
      %p161 = scmp.le.s32.totalorder 1, %s16
      %p162 = scmp.lt.s32.totalorder %s16, 5
      %p163 = pnand %p161, %p162
      %p164 = pneg %p163
      // Predicated region
      $region25: #{tpu_custom_call.1} parent=5 // pred_check
        _
      $region26: #{tpu_custom_call.1} parent=5 // pred_check_branch
        %166 = sbr.rel (%p163) target = $region28
      $region27: #{tpu_custom_call.1} parent=5 // pred_region
        %s167 = ssub.s32 %s16, 1
        %p168 = scmp.lt.s32.totalorder %s25, 1
        %s169 = scalar_select %p168, %s25, 1
        %s170 = smul.addr %s169, 54
        %s171 = smul.addr %s170, 4
        %s172 = scalar_lea.vmem %s0, %s171
        %p173 = pneg %p54
        %p174 = pneg %p51
        %p175 = pneg %p75
        %p176 = pneg %p72
        %p177 = pneg %p103
        %p178 = pneg %p100
        %s179 = sand.u32 %s90, 1
        %s180 = scalar_lea.sflag [#allocation3], %s179
        %s181 = sand.u32 %s90, 1
        %s182 = smul.addr %s181, 64
        %s183 = scalar_lea.vmem [#allocation2], %s182
        %p184 = pneg %p131
        %p185 = pneg %p128
        %s186 = sand.u32 %s118, 1
        %s187 = scalar_lea.sflag [#allocation5], %s186
        %s188 = sand.u32 %s118, 1
        %s189 = smul.addr %s188, 2
        %s190 = scalar_lea.vmem [#allocation4], %s189
        %p191 = scmp.lt.s32.totalorder %s25, 1
        %s192 = scalar_select %p191, %s25, 1
        %s193 = smul.addr %s192, 54
        %s194 = smul.addr %s193, 4
        %s195 = scalar_lea.vmem %s0, %s194
        %s196 = smul.u32 16, %s26
        %s198 = smul.u32 %s26, 8
        %s199 = smul.u32 %s198, 3
        %s200 = smul.addr %s199, 4
        %s201 = scalar_lea.vmem %s195, %s200
        %v202 = vld [vmem:[%s201] sm:$0xf]
        %v203 = vld [vmem:[%s201 + $0x4] sm:$0xf]
        %v204 = vld [vmem:[%s201 + $0xc] sm:$0xf]
        %v205 = vld [vmem:[%s201 + $0x10] sm:$0xf]
        %v206 = vld [vmem:[%s201 + $0x18] sm:$0xf]
        %v207 = vld [vmem:[%s201 + $0x1c] sm:$0xf]
        %v208 = vld [vmem:[%s201 + $0x24] sm:$0xf]
        %v209 = vld [vmem:[%s201 + $0x28] sm:$0xf]
        %v210 = vld [vmem:[%s201 + $0x30] sm:$0xf]
        %v211 = vld [vmem:[%s201 + $0x34] sm:$0xf]
        %v212 = vld [vmem:[%s201 + $0x3c] sm:$0xf]
        %v213 = vld [vmem:[%s201 + $0x40] sm:$0xf]
        %v214 = vld [vmem:[%s201 + $0x48] sm:$0xf]
        %v215 = vld [vmem:[%s201 + $0x4c] sm:$0xf]
        %v216 = vld [vmem:[%s201 + $0x54] sm:$0xf]
        %v217 = vld [vmem:[%s201 + $0x58] sm:$0xf]
        %v218 = vld [vmem:[%s1] sm:$0xf]
        %v219 = vld [vmem:[%s1 + $0x4] sm:$0xf]
        %v220 = vld [vmem:[%s201 + $0x8] sm:$0x1]
        %v221 = vld [vmem:[%s201 + $0x14] sm:$0x1]
        %v222 = vld [vmem:[%s201 + $0x20] sm:$0x1]
        %v223 = vld [vmem:[%s201 + $0x2c] sm:$0x1]
        %v224 = vld [vmem:[%s201 + $0x38] sm:$0x1]
        %v225 = vld [vmem:[%s201 + $0x44] sm:$0x1]
        %v226 = vld [vmem:[%s201 + $0x50] sm:$0x1]
        %v227 = vld [vmem:[%s201 + $0x5c] sm:$0x1]
        %vm228 = vsmask.f32 3328
        %vm229 = vsmask.f32 7440
        %vm230 = vmor %vm228, %vm229
        %v232 = vshrl.u32 %v202, 16
        %v234 = vrot.slane %v232, 4
        %v235 = vshll.u32 %v202, 16
        %v237 = vrot.slane %v235, 5
        %v238 = vor.u32 %v234, %v237
        %v239 = vrot.slane %v238, 4
        %v241 = vshll.u32 %v203, 16
        %v243 = vrot.slane %v241, 5
        %v244 = vsel %vm230, %v239, %v243
        %v245 = vshrl.u32 %v203, 16
        %v247 = vrot.slane %v245, 4
        %v248 = vor.u32 %v247, %v243
        %v249 = vrot.slane %v248, 4
        %v251 = vshll.u32 %v220, 16
        %v253 = vrot.slane %v251, 5
        %v254 = vsel %vm230, %v249, %v253
        %v256 = vshrl.u32 %v204, 16
        %v258 = vrot.slane %v256, 4
        %v259 = vshll.u32 %v204, 16
        %v261 = vrot.slane %v259, 5
        %v262 = vor.u32 %v258, %v261
        %v263 = vrot.slane %v262, 4
        %v265 = vshll.u32 %v205, 16
        %v267 = vrot.slane %v265, 5
        %v268 = vsel %vm230, %v263, %v267
        %v269 = vshrl.u32 %v205, 16
        %v271 = vrot.slane %v269, 4
        %v272 = vor.u32 %v271, %v267
        %v273 = vrot.slane %v272, 4
        %v275 = vshll.u32 %v221, 16
        %v277 = vrot.slane %v275, 5
        %v278 = vsel %vm230, %v273, %v277
        %v280 = vshrl.u32 %v206, 16
        %v282 = vrot.slane %v280, 4
        %v283 = vshll.u32 %v206, 16
        %v285 = vrot.slane %v283, 5
        %v286 = vor.u32 %v282, %v285
        %v287 = vrot.slane %v286, 4
        %v289 = vshll.u32 %v207, 16
        %v291 = vrot.slane %v289, 5
        %v292 = vsel %vm230, %v287, %v291
        %v293 = vshrl.u32 %v207, 16
        %v295 = vrot.slane %v293, 4
        %v296 = vor.u32 %v295, %v291
        %v297 = vrot.slane %v296, 4
        %v299 = vshll.u32 %v222, 16
        %v301 = vrot.slane %v299, 5
        %v302 = vsel %vm230, %v297, %v301
        %v304 = vshrl.u32 %v208, 16
        %v306 = vrot.slane %v304, 4
        %v307 = vshll.u32 %v208, 16
        %v309 = vrot.slane %v307, 5
        %v310 = vor.u32 %v306, %v309
        %v311 = vrot.slane %v310, 4
        %v313 = vshll.u32 %v209, 16
        %v315 = vrot.slane %v313, 5
        %v316 = vsel %vm230, %v311, %v315
        %v317 = vshrl.u32 %v209, 16
        %v319 = vrot.slane %v317, 4
        %v320 = vor.u32 %v319, %v315
        %v321 = vrot.slane %v320, 4
        %v323 = vshll.u32 %v223, 16
        %v325 = vrot.slane %v323, 5
        %v326 = vsel %vm230, %v321, %v325
        %v328 = vshrl.u32 %v210, 16
        %v330 = vrot.slane %v328, 4
        %v331 = vshll.u32 %v210, 16
        %v333 = vrot.slane %v331, 5
        %v334 = vor.u32 %v330, %v333
        %v335 = vrot.slane %v334, 4
        %v337 = vshll.u32 %v211, 16
        %v339 = vrot.slane %v337, 5
        %v340 = vsel %vm230, %v335, %v339
        %v341 = vshrl.u32 %v211, 16
        %v343 = vrot.slane %v341, 4
        %v344 = vor.u32 %v343, %v339
        %v345 = vrot.slane %v344, 4
        %v347 = vshll.u32 %v224, 16
        %v349 = vrot.slane %v347, 5
        %v350 = vsel %vm230, %v345, %v349
        %v352 = vshrl.u32 %v212, 16
        %v354 = vrot.slane %v352, 4
        %v355 = vshll.u32 %v212, 16
        %v357 = vrot.slane %v355, 5
        %v358 = vor.u32 %v354, %v357
        %v359 = vrot.slane %v358, 4
        %v361 = vshll.u32 %v213, 16
        %v363 = vrot.slane %v361, 5
        %v364 = vsel %vm230, %v359, %v363
        %v365 = vshrl.u32 %v213, 16
        %v367 = vrot.slane %v365, 4
        %v368 = vor.u32 %v367, %v363
        %v369 = vrot.slane %v368, 4
        %v371 = vshll.u32 %v225, 16
        %v373 = vrot.slane %v371, 5
        %v374 = vsel %vm230, %v369, %v373
        %v376 = vshrl.u32 %v214, 16
        %v378 = vrot.slane %v376, 4
        %v379 = vshll.u32 %v214, 16
        %v381 = vrot.slane %v379, 5
        %v382 = vor.u32 %v378, %v381
        %v383 = vrot.slane %v382, 4
        %v385 = vshll.u32 %v215, 16
        %v387 = vrot.slane %v385, 5
        %v388 = vsel %vm230, %v383, %v387
        %v389 = vshrl.u32 %v215, 16
        %v391 = vrot.slane %v389, 4
        %v392 = vor.u32 %v391, %v387
        %v393 = vrot.slane %v392, 4
        %v395 = vshll.u32 %v226, 16
        %v397 = vrot.slane %v395, 5
        %v398 = vsel %vm230, %v393, %v397
        %v400 = vshrl.u32 %v216, 16
        %v402 = vrot.slane %v400, 4
        %v403 = vshll.u32 %v216, 16
        %v405 = vrot.slane %v403, 5
        %v406 = vor.u32 %v402, %v405
        %v407 = vrot.slane %v406, 4
        %v409 = vshll.u32 %v217, 16
        %v411 = vrot.slane %v409, 5
        %v412 = vsel %vm230, %v407, %v411
        %v413 = vshrl.u32 %v217, 16
        %v415 = vrot.slane %v413, 4
        %v416 = vor.u32 %v415, %v411
        %v417 = vrot.slane %v416, 4
        %v419 = vshll.u32 %v227, 16
        %v421 = vrot.slane %v419, 5
        %v422 = vsel %vm230, %v417, %v421
        %s423 = scalar_lea.vmem %s1, 8
        %v424 = vld [vmem:[%s423] sm:$0xf]
        %v425 = vld [vmem:[%s423 + $0x4] sm:$0xf]
        %v426 = vunpack.c.l.b16 %v244
        %v427 = vunpack.c.l.b16 %v254
        %v428 = vunpack.c.l.b16 %v268
        %v429 = vunpack.c.l.b16 %v278
        %v430 = vunpack.c.l.b16 %v292
        %v431 = vunpack.c.l.b16 %v302
        %v432 = vunpack.c.l.b16 %v316
        %v433 = vunpack.c.l.b16 %v326
        %v434 = vunpack.c.l.b16 %v340
        %v435 = vunpack.c.l.b16 %v350
        %v436 = vunpack.c.l.b16 %v364
        %v437 = vunpack.c.l.b16 %v374
        %v438 = vunpack.c.l.b16 %v388
        %v439 = vunpack.c.l.b16 %v398
        %v440 = vunpack.c.l.b16 %v412
        %v441 = vunpack.c.l.b16 %v422
        %v442 = vpack.c.b16 %v427, %v426
        %v443 = vpack.c.b16 %v429, %v428
        %v444 = vpack.c.b16 %v431, %v430
        %v445 = vpack.c.b16 %v433, %v432
        %v446 = vpack.c.b16 %v435, %v434
        %v447 = vpack.c.b16 %v437, %v436
        %v448 = vpack.c.b16 %v439, %v438
        %v449 = vpack.c.b16 %v441, %v440
        %v452 = vunpack.c.l.b16 %v424
        %v453 = vunpack.c.l.b16 %v425
        %v454 = vpack.c.b16 %v453, %v452
        %vm456 = vcmask 130048
        %v458 = vsel %vm456, %v442, 0
        %v461 = vsel %vm456, %v443, 0
        %v464 = vsel %vm456, %v444, 0
        %v467 = vsel %vm456, %v445, 0
        %v470 = vsel %vm456, %v446, 0
        %v473 = vsel %vm456, %v447, 0
        %v476 = vsel %vm456, %v448, 0
        %v479 = vsel %vm456, %v449, 0
        %481 = vmatpush.bf16.msra.mxu0 0
        %482 = vmatpush.bf16.msra.mxu0 0
        %483 = vmatpush.bf16.msra.mxu0 0
        %484 = vmatpush.bf16.msra.mxu0 0
        %485 = vmatpush.bf16.msra.mxu0 0
        %486 = vmatpush.bf16.msra.mxu0 0
        %487 = vmatpush.bf16.msra.mxu0 0
        %488 = vmatpush.bf16.msra.mxu0 %v454
        %489 = vmatmul.bf16.gmra.mxu0 %v458
        %v490 = vpop.f32.mrf.mxu0
        %v491 = vadd.f32 0.0, %v490
        %v492 = vpop.f32.mrf.mxu0
        %v493 = vadd.f32 0.0, %v492
        %494 = vmatmul.bf16.gmra.mxu0 %v461
        %v495 = vpop.f32.mrf.mxu0
        %v496 = vadd.f32 0.0, %v495
        %v497 = vpop.f32.mrf.mxu0
        %v498 = vadd.f32 0.0, %v497
        %499 = vmatmul.bf16.gmra.mxu0 %v464
        %v500 = vpop.f32.mrf.mxu0
        %v501 = vadd.f32 0.0, %v500
        %v502 = vpop.f32.mrf.mxu0
        %v503 = vadd.f32 0.0, %v502
        %504 = vmatmul.bf16.gmra.mxu0 %v467
        %v505 = vpop.f32.mrf.mxu0
        %v506 = vadd.f32 0.0, %v505
        %v507 = vpop.f32.mrf.mxu0
        %v508 = vadd.f32 0.0, %v507
        %509 = vmatmul.bf16.gmra.mxu0 %v470
        %v510 = vpop.f32.mrf.mxu0
        %v511 = vadd.f32 0.0, %v510
        %v512 = vpop.f32.mrf.mxu0
        %v513 = vadd.f32 0.0, %v512
        %514 = vmatmul.bf16.gmra.mxu0 %v473
        %v515 = vpop.f32.mrf.mxu0
        %v516 = vadd.f32 0.0, %v515
        %v517 = vpop.f32.mrf.mxu0
        %v518 = vadd.f32 0.0, %v517
        %519 = vmatmul.bf16.gmra.mxu0 %v476
        %v520 = vpop.f32.mrf.mxu0
        %v521 = vadd.f32 0.0, %v520
        %v522 = vpop.f32.mrf.mxu0
        %v523 = vadd.f32 0.0, %v522
        %524 = vmatmul.bf16.gmra.mxu0 %v479
        %v525 = vpop.f32.mrf.mxu0
        %v526 = vadd.f32 0.0, %v525
        %v527 = vpop.f32.mrf.mxu0
        %v528 = vadd.f32 0.0, %v527
        %529 = vdwg.mxu0
        %v546 = vunpack.c.l.b16 %v202
        %v547 = vunpack.c.l.b16 %v203
        %v548 = vunpack.c.l.b16 %v204
        %v549 = vunpack.c.l.b16 %v205
        %v550 = vunpack.c.l.b16 %v206
        %v551 = vunpack.c.l.b16 %v207
        %v552 = vunpack.c.l.b16 %v208
        %v553 = vunpack.c.l.b16 %v209
        %v554 = vunpack.c.l.b16 %v210
        %v555 = vunpack.c.l.b16 %v211
        %v556 = vunpack.c.l.b16 %v212
        %v557 = vunpack.c.l.b16 %v213
        %v558 = vunpack.c.l.b16 %v214
        %v559 = vunpack.c.l.b16 %v215
        %v560 = vunpack.c.l.b16 %v216
        %v561 = vunpack.c.l.b16 %v217
        %v562 = vpack.c.b16 %v547, %v546
        %v563 = vpack.c.b16 %v549, %v548
        %v564 = vpack.c.b16 %v551, %v550
        %v565 = vpack.c.b16 %v553, %v552
        %v566 = vpack.c.b16 %v555, %v554
        %v567 = vpack.c.b16 %v557, %v556
        %v568 = vpack.c.b16 %v559, %v558
        %v569 = vpack.c.b16 %v561, %v560
        %v572 = vunpack.c.l.b16 %v218
        %v573 = vunpack.c.l.b16 %v219
        %v574 = vpack.c.b16 %v573, %v572
        %v577 = vsel %vm456, %v562, 0
        %v580 = vsel %vm456, %v563, 0
        %v583 = vsel %vm456, %v564, 0
        %v586 = vsel %vm456, %v565, 0
        %v589 = vsel %vm456, %v566, 0
        %v592 = vsel %vm456, %v567, 0
        %v595 = vsel %vm456, %v568, 0
        %v598 = vsel %vm456, %v569, 0
        %600 = vmatpush.bf16.msra.mxu0 0
        %601 = vmatpush.bf16.msra.mxu0 0
        %602 = vmatpush.bf16.msra.mxu0 0
        %603 = vmatpush.bf16.msra.mxu0 0
        %604 = vmatpush.bf16.msra.mxu0 0
        %605 = vmatpush.bf16.msra.mxu0 0
        %606 = vmatpush.bf16.msra.mxu0 0
        %607 = vmatpush.bf16.msra.mxu0 %v574
        %608 = vmatmul.bf16.gmra.mxu0 %v577
        %v609 = vpop.f32.mrf.mxu0
        %v610 = vadd.f32 %v491, %v609
        %v611 = vpop.f32.mrf.mxu0
        %v612 = vadd.f32 %v493, %v611
        %613 = vmatmul.bf16.gmra.mxu0 %v580
        %v614 = vpop.f32.mrf.mxu0
        %v615 = vadd.f32 %v496, %v614
        %v616 = vpop.f32.mrf.mxu0
        %v617 = vadd.f32 %v498, %v616
        %618 = vmatmul.bf16.gmra.mxu0 %v583
        %v619 = vpop.f32.mrf.mxu0
        %v620 = vadd.f32 %v501, %v619
        %v621 = vpop.f32.mrf.mxu0
        %v622 = vadd.f32 %v503, %v621
        %623 = vmatmul.bf16.gmra.mxu0 %v586
        %v624 = vpop.f32.mrf.mxu0
        %v625 = vadd.f32 %v506, %v624
        %v626 = vpop.f32.mrf.mxu0
        %v627 = vadd.f32 %v508, %v626
        %628 = vmatmul.bf16.gmra.mxu0 %v589
        %v629 = vpop.f32.mrf.mxu0
        %v630 = vadd.f32 %v511, %v629
        %v631 = vpop.f32.mrf.mxu0
        %v632 = vadd.f32 %v513, %v631
        %633 = vmatmul.bf16.gmra.mxu0 %v592
        %v634 = vpop.f32.mrf.mxu0
        %v635 = vadd.f32 %v516, %v634
        %v636 = vpop.f32.mrf.mxu0
        %v637 = vadd.f32 %v518, %v636
        %638 = vmatmul.bf16.gmra.mxu0 %v595
        %v639 = vpop.f32.mrf.mxu0
        %v640 = vadd.f32 %v521, %v639
        %v641 = vpop.f32.mrf.mxu0
        %v642 = vadd.f32 %v523, %v641
        %643 = vmatmul.bf16.gmra.mxu0 %v598
        %v644 = vpop.f32.mrf.mxu0
        %v645 = vadd.f32 %v526, %v644
        %v646 = vpop.f32.mrf.mxu0
        %v647 = vadd.f32 %v528, %v646
        %648 = vdwg.mxu0
        %v649 = vld [vmem:[%s201] sm:$0xe]
        %v650 = vld [vmem:[%s201 + $0xc] sm:$0xe]
        %v651 = vld [vmem:[%s201 + $0x18] sm:$0xe]
        %v652 = vld [vmem:[%s201 + $0x24] sm:$0xe]
        %v653 = vld [vmem:[%s201 + $0x30] sm:$0xe]
        %v654 = vld [vmem:[%s201 + $0x3c] sm:$0xe]
        %v655 = vld [vmem:[%s201 + $0x48] sm:$0xe]
        %v656 = vld [vmem:[%s201 + $0x54] sm:$0xe]
        %vm673 = vcmask 1042432
        %vm674 = vcmask 1046532
        %vm675 = vmor %vm673, %vm674
        %v676 = vrot.slane %v649, 5
        %v677 = vrot.slane %v676, 4
        %v678 = vrot.slane %v203, 5
        %v679 = vsel %vm675, %v677, %v678
        %v680 = vrot.slane %v678, 4
        %v681 = vrot.slane %v220, 5
        %v682 = vsel %vm675, %v680, %v681
        %v683 = vrot.slane %v650, 5
        %v684 = vrot.slane %v683, 4
        %v685 = vrot.slane %v205, 5
        %v686 = vsel %vm675, %v684, %v685
        %v687 = vrot.slane %v685, 4
        %v688 = vrot.slane %v221, 5
        %v689 = vsel %vm675, %v687, %v688
        %v690 = vrot.slane %v651, 5
        %v691 = vrot.slane %v690, 4
        %v692 = vrot.slane %v207, 5
        %v693 = vsel %vm675, %v691, %v692
        %v694 = vrot.slane %v692, 4
        %v695 = vrot.slane %v222, 5
        %v696 = vsel %vm675, %v694, %v695
        %v697 = vrot.slane %v652, 5
        %v698 = vrot.slane %v697, 4
        %v699 = vrot.slane %v209, 5
        %v700 = vsel %vm675, %v698, %v699
        %v701 = vrot.slane %v699, 4
        %v702 = vrot.slane %v223, 5
        %v703 = vsel %vm675, %v701, %v702
        %v704 = vrot.slane %v653, 5
        %v705 = vrot.slane %v704, 4
        %v706 = vrot.slane %v211, 5
        %v707 = vsel %vm675, %v705, %v706
        %v708 = vrot.slane %v706, 4
        %v709 = vrot.slane %v224, 5
        %v710 = vsel %vm675, %v708, %v709
        %v711 = vrot.slane %v654, 5
        %v712 = vrot.slane %v711, 4
        %v713 = vrot.slane %v213, 5
        %v714 = vsel %vm675, %v712, %v713
        %v715 = vrot.slane %v713, 4
        %v716 = vrot.slane %v225, 5
        %v717 = vsel %vm675, %v715, %v716
        %v718 = vrot.slane %v655, 5
        %v719 = vrot.slane %v718, 4
        %v720 = vrot.slane %v215, 5
        %v721 = vsel %vm675, %v719, %v720
        %v722 = vrot.slane %v720, 4
        %v723 = vrot.slane %v226, 5
        %v724 = vsel %vm675, %v722, %v723
        %v725 = vrot.slane %v656, 5
        %v726 = vrot.slane %v725, 4
        %v727 = vrot.slane %v217, 5
        %v728 = vsel %vm675, %v726, %v727
        %v729 = vrot.slane %v727, 4
        %v730 = vrot.slane %v227, 5
        %v731 = vsel %vm675, %v729, %v730
        %s732 = scalar_lea.vmem %s1, 16
        %v733 = vld [vmem:[%s732] sm:$0xf]
        %v734 = vld [vmem:[%s732 + $0x4] sm:$0xf]
        %v735 = vunpack.c.l.b16 %v679
        %v736 = vunpack.c.l.b16 %v682
        %v737 = vunpack.c.l.b16 %v686
        %v738 = vunpack.c.l.b16 %v689
        %v739 = vunpack.c.l.b16 %v693
        %v740 = vunpack.c.l.b16 %v696
        %v741 = vunpack.c.l.b16 %v700
        %v742 = vunpack.c.l.b16 %v703
        %v743 = vunpack.c.l.b16 %v707
        %v744 = vunpack.c.l.b16 %v710
        %v745 = vunpack.c.l.b16 %v714
        %v746 = vunpack.c.l.b16 %v717
        %v747 = vunpack.c.l.b16 %v721
        %v748 = vunpack.c.l.b16 %v724
        %v749 = vunpack.c.l.b16 %v728
        %v750 = vunpack.c.l.b16 %v731
        %v751 = vpack.c.b16 %v736, %v735
        %v752 = vpack.c.b16 %v738, %v737
        %v753 = vpack.c.b16 %v740, %v739
        %v754 = vpack.c.b16 %v742, %v741
        %v755 = vpack.c.b16 %v744, %v743
        %v756 = vpack.c.b16 %v746, %v745
        %v757 = vpack.c.b16 %v748, %v747
        %v758 = vpack.c.b16 %v750, %v749
        %v761 = vunpack.c.l.b16 %v733
        %v762 = vunpack.c.l.b16 %v734
        %v763 = vpack.c.b16 %v762, %v761
        %v766 = vsel %vm456, %v751, 0
        %v769 = vsel %vm456, %v752, 0
        %v772 = vsel %vm456, %v753, 0
        %v775 = vsel %vm456, %v754, 0
        %v778 = vsel %vm456, %v755, 0
        %v781 = vsel %vm456, %v756, 0
        %v784 = vsel %vm456, %v757, 0
        %v787 = vsel %vm456, %v758, 0
        %789 = vmatpush.bf16.msra.mxu0 0
        %790 = vmatpush.bf16.msra.mxu0 0
        %791 = vmatpush.bf16.msra.mxu0 0
        %792 = vmatpush.bf16.msra.mxu0 0
        %793 = vmatpush.bf16.msra.mxu0 0
        %794 = vmatpush.bf16.msra.mxu0 0
        %795 = vmatpush.bf16.msra.mxu0 0
        %796 = vmatpush.bf16.msra.mxu0 %v763
        %797 = vmatmul.bf16.gmra.mxu0 %v766
        %v798 = vpop.f32.mrf.mxu0
        %v799 = vadd.f32 0.0, %v798
        %v800 = vpop.f32.mrf.mxu0
        %v801 = vadd.f32 0.0, %v800
        %802 = vmatmul.bf16.gmra.mxu0 %v769
        %v803 = vpop.f32.mrf.mxu0
        %v804 = vadd.f32 0.0, %v803
        %v805 = vpop.f32.mrf.mxu0
        %v806 = vadd.f32 0.0, %v805
        %807 = vmatmul.bf16.gmra.mxu0 %v772
        %v808 = vpop.f32.mrf.mxu0
        %v809 = vadd.f32 0.0, %v808
        %v810 = vpop.f32.mrf.mxu0
        %v811 = vadd.f32 0.0, %v810
        %812 = vmatmul.bf16.gmra.mxu0 %v775
        %v813 = vpop.f32.mrf.mxu0
        %v814 = vadd.f32 0.0, %v813
        %v815 = vpop.f32.mrf.mxu0
        %v816 = vadd.f32 0.0, %v815
        %817 = vmatmul.bf16.gmra.mxu0 %v778
        %v818 = vpop.f32.mrf.mxu0
        %v819 = vadd.f32 0.0, %v818
        %v820 = vpop.f32.mrf.mxu0
        %v821 = vadd.f32 0.0, %v820
        %822 = vmatmul.bf16.gmra.mxu0 %v781
        %v823 = vpop.f32.mrf.mxu0
        %v824 = vadd.f32 0.0, %v823
        %v825 = vpop.f32.mrf.mxu0
        %v826 = vadd.f32 0.0, %v825
        %827 = vmatmul.bf16.gmra.mxu0 %v784
        %v828 = vpop.f32.mrf.mxu0
        %v829 = vadd.f32 0.0, %v828
        %v830 = vpop.f32.mrf.mxu0
        %v831 = vadd.f32 0.0, %v830
        %832 = vmatmul.bf16.gmra.mxu0 %v787
        %v833 = vpop.f32.mrf.mxu0
        %v834 = vadd.f32 0.0, %v833
        %v835 = vpop.f32.mrf.mxu0
        %v836 = vadd.f32 0.0, %v835
        %837 = vdwg.mxu0
        %v838 = vadd.f32 %v610, %v799
        %v839 = vadd.f32 %v612, %v801
        %v840 = vadd.f32 %v615, %v804
        %v841 = vadd.f32 %v617, %v806
        %v842 = vadd.f32 %v620, %v809
        %v843 = vadd.f32 %v622, %v811
        %v844 = vadd.f32 %v625, %v814
        %v845 = vadd.f32 %v627, %v816
        %v846 = vadd.f32 %v630, %v819
        %v847 = vadd.f32 %v632, %v821
        %v848 = vadd.f32 %v635, %v824
        %v849 = vadd.f32 %v637, %v826
        %v850 = vadd.f32 %v640, %v829
        %v851 = vadd.f32 %v642, %v831
        %v852 = vadd.f32 %v645, %v834
        %v853 = vadd.f32 %v647, %v836
        %s854 = sadd.s32 %s198, 1
        %s855 = smul.u32 %s854, 3
        %s856 = smul.addr %s855, 4
        %s857 = scalar_lea.vmem %s195, %s856
        %v858 = vld [vmem:[%s857] sm:$0xf]
        %v859 = vld [vmem:[%s857 + $0x4] sm:$0xf]
        %v860 = vld [vmem:[%s857 + $0xc] sm:$0xf]
        %v861 = vld [vmem:[%s857 + $0x10] sm:$0xf]
        %v862 = vld [vmem:[%s857 + $0x18] sm:$0xf]
        %v863 = vld [vmem:[%s857 + $0x1c] sm:$0xf]
        %v864 = vld [vmem:[%s857 + $0x24] sm:$0xf]
        %v865 = vld [vmem:[%s857 + $0x28] sm:$0xf]
        %v866 = vld [vmem:[%s857 + $0x30] sm:$0xf]
        %v867 = vld [vmem:[%s857 + $0x34] sm:$0xf]
        %v868 = vld [vmem:[%s857 + $0x3c] sm:$0xf]
        %v869 = vld [vmem:[%s857 + $0x40] sm:$0xf]
        %v870 = vld [vmem:[%s857 + $0x48] sm:$0xf]
        %v871 = vld [vmem:[%s857 + $0x4c] sm:$0xf]
        %v872 = vld [vmem:[%s857 + $0x54] sm:$0xf]
        %v873 = vld [vmem:[%s857 + $0x58] sm:$0xf]
        %s874 = scalar_lea.vmem %s1, 24
        %v875 = vld [vmem:[%s874] sm:$0xf]
        %v876 = vld [vmem:[%s874 + $0x4] sm:$0xf]
        %v893 = vunpack.c.l.b16 %v858
        %v894 = vunpack.c.l.b16 %v859
        %v895 = vunpack.c.l.b16 %v860
        %v896 = vunpack.c.l.b16 %v861
        %v897 = vunpack.c.l.b16 %v862
        %v898 = vunpack.c.l.b16 %v863
        %v899 = vunpack.c.l.b16 %v864
        %v900 = vunpack.c.l.b16 %v865
        %v901 = vunpack.c.l.b16 %v866
        %v902 = vunpack.c.l.b16 %v867
        %v903 = vunpack.c.l.b16 %v868
        %v904 = vunpack.c.l.b16 %v869
        %v905 = vunpack.c.l.b16 %v870
        %v906 = vunpack.c.l.b16 %v871
        %v907 = vunpack.c.l.b16 %v872
        %v908 = vunpack.c.l.b16 %v873
        %v909 = vpack.c.b16 %v894, %v893
        %v910 = vpack.c.b16 %v896, %v895
        %v911 = vpack.c.b16 %v898, %v897
        %v912 = vpack.c.b16 %v900, %v899
        %v913 = vpack.c.b16 %v902, %v901
        %v914 = vpack.c.b16 %v904, %v903
        %v915 = vpack.c.b16 %v906, %v905
        %v916 = vpack.c.b16 %v908, %v907
        %v919 = vunpack.c.l.b16 %v875
        %v920 = vunpack.c.l.b16 %v876
        %v921 = vpack.c.b16 %v920, %v919
        %v924 = vsel %vm456, %v909, 0
        %v927 = vsel %vm456, %v910, 0
        %v930 = vsel %vm456, %v911, 0
        %v933 = vsel %vm456, %v912, 0
        %v936 = vsel %vm456, %v913, 0
        %v939 = vsel %vm456, %v914, 0
        %v942 = vsel %vm456, %v915, 0
        %v945 = vsel %vm456, %v916, 0
        %947 = vmatpush.bf16.msra.mxu0 0
        %948 = vmatpush.bf16.msra.mxu0 0
        %949 = vmatpush.bf16.msra.mxu0 0
        %950 = vmatpush.bf16.msra.mxu0 0
        %951 = vmatpush.bf16.msra.mxu0 0
        %952 = vmatpush.bf16.msra.mxu0 0
        %953 = vmatpush.bf16.msra.mxu0 0
        %954 = vmatpush.bf16.msra.mxu0 %v921
        %955 = vmatmul.bf16.gmra.mxu0 %v924
        %v956 = vpop.f32.mrf.mxu0
        %v957 = vadd.f32 0.0, %v956
        %v958 = vpop.f32.mrf.mxu0
        %v959 = vadd.f32 0.0, %v958
        %960 = vmatmul.bf16.gmra.mxu0 %v927
        %v961 = vpop.f32.mrf.mxu0
        %v962 = vadd.f32 0.0, %v961
        %v963 = vpop.f32.mrf.mxu0
        %v964 = vadd.f32 0.0, %v963
        %965 = vmatmul.bf16.gmra.mxu0 %v930
        %v966 = vpop.f32.mrf.mxu0
        %v967 = vadd.f32 0.0, %v966
        %v968 = vpop.f32.mrf.mxu0
        %v969 = vadd.f32 0.0, %v968
        %970 = vmatmul.bf16.gmra.mxu0 %v933
        %v971 = vpop.f32.mrf.mxu0
        %v972 = vadd.f32 0.0, %v971
        %v973 = vpop.f32.mrf.mxu0
        %v974 = vadd.f32 0.0, %v973
        %975 = vmatmul.bf16.gmra.mxu0 %v936
        %v976 = vpop.f32.mrf.mxu0
        %v977 = vadd.f32 0.0, %v976
        %v978 = vpop.f32.mrf.mxu0
        %v979 = vadd.f32 0.0, %v978
        %980 = vmatmul.bf16.gmra.mxu0 %v939
        %v981 = vpop.f32.mrf.mxu0
        %v982 = vadd.f32 0.0, %v981
        %v983 = vpop.f32.mrf.mxu0
        %v984 = vadd.f32 0.0, %v983
        %985 = vmatmul.bf16.gmra.mxu0 %v942
        %v986 = vpop.f32.mrf.mxu0
        %v987 = vadd.f32 0.0, %v986
        %v988 = vpop.f32.mrf.mxu0
        %v989 = vadd.f32 0.0, %v988
        %990 = vmatmul.bf16.gmra.mxu0 %v945
        %v991 = vpop.f32.mrf.mxu0
        %v992 = vadd.f32 0.0, %v991
        %v993 = vpop.f32.mrf.mxu0
        %v994 = vadd.f32 0.0, %v993
        %995 = vdwg.mxu0
        %v996 = vadd.f32 %v838, %v957
        %v997 = vadd.f32 %v839, %v959
        %v998 = vadd.f32 %v840, %v962
        %v999 = vadd.f32 %v841, %v964
        %v1000 = vadd.f32 %v842, %v967
        %v1001 = vadd.f32 %v843, %v969
        %v1002 = vadd.f32 %v844, %v972
        %v1003 = vadd.f32 %v845, %v974
        %v1004 = vadd.f32 %v846, %v977
        %v1005 = vadd.f32 %v847, %v979
        %v1006 = vadd.f32 %v848, %v982
        %v1007 = vadd.f32 %v849, %v984
        %v1008 = vadd.f32 %v850, %v987
        %v1009 = vadd.f32 %v851, %v989
        %v1010 = vadd.f32 %v852, %v992
        %v1011 = vadd.f32 %v853, %v994
        %v1012 = vld [vmem:[%s857] sm:$0xf]
        %v1013 = vld [vmem:[%s857 + $0x4] sm:$0xf]
        %v1014 = vld [vmem:[%s857 + $0x8] sm:$0x1]
        %v1015 = vld [vmem:[%s857 + $0xc] sm:$0xf]
        %v1016 = vld [vmem:[%s857 + $0x10] sm:$0xf]
        %v1017 = vld [vmem:[%s857 + $0x14] sm:$0x1]
        %v1018 = vld [vmem:[%s857 + $0x18] sm:$0xf]
        %v1019 = vld [vmem:[%s857 + $0x1c] sm:$0xf]
        %v1020 = vld [vmem:[%s857 + $0x20] sm:$0x1]
        %v1021 = vld [vmem:[%s857 + $0x24] sm:$0xf]
        %v1022 = vld [vmem:[%s857 + $0x28] sm:$0xf]
        %v1023 = vld [vmem:[%s857 + $0x2c] sm:$0x1]
        %v1024 = vld [vmem:[%s857 + $0x30] sm:$0xf]
        %v1025 = vld [vmem:[%s857 + $0x34] sm:$0xf]
        %v1026 = vld [vmem:[%s857 + $0x38] sm:$0x1]
        %v1027 = vld [vmem:[%s857 + $0x3c] sm:$0xf]
        %v1028 = vld [vmem:[%s857 + $0x40] sm:$0xf]
        %v1029 = vld [vmem:[%s857 + $0x44] sm:$0x1]
        %v1030 = vld [vmem:[%s857 + $0x48] sm:$0xf]
        %v1031 = vld [vmem:[%s857 + $0x4c] sm:$0xf]
        %v1032 = vld [vmem:[%s857 + $0x50] sm:$0x1]
        %v1033 = vld [vmem:[%s857 + $0x54] sm:$0xf]
        %v1034 = vld [vmem:[%s857 + $0x58] sm:$0xf]
        %v1035 = vld [vmem:[%s857 + $0x5c] sm:$0x1]
        %v1037 = vshrl.u32 %v1012, 16
        %v1039 = vrot.slane %v1037, 4
        %v1040 = vshll.u32 %v1012, 16
        %v1042 = vrot.slane %v1040, 5
        %v1043 = vor.u32 %v1039, %v1042
        %v1044 = vrot.slane %v1043, 4
        %v1046 = vshll.u32 %v1013, 16
        %v1048 = vrot.slane %v1046, 5
        %v1049 = vsel %vm230, %v1044, %v1048
        %v1050 = vshrl.u32 %v1013, 16
        %v1052 = vrot.slane %v1050, 4
        %v1053 = vor.u32 %v1052, %v1048
        %v1054 = vrot.slane %v1053, 4
        %v1056 = vshll.u32 %v1014, 16
        %v1058 = vrot.slane %v1056, 5
        %v1059 = vsel %vm230, %v1054, %v1058
        %v1061 = vshrl.u32 %v1015, 16
        %v1063 = vrot.slane %v1061, 4
        %v1064 = vshll.u32 %v1015, 16
        %v1066 = vrot.slane %v1064, 5
        %v1067 = vor.u32 %v1063, %v1066
        %v1068 = vrot.slane %v1067, 4
        %v1070 = vshll.u32 %v1016, 16
        %v1072 = vrot.slane %v1070, 5
        %v1073 = vsel %vm230, %v1068, %v1072
        %v1074 = vshrl.u32 %v1016, 16
        %v1076 = vrot.slane %v1074, 4
        %v1077 = vor.u32 %v1076, %v1072
        %v1078 = vrot.slane %v1077, 4
        %v1080 = vshll.u32 %v1017, 16
        %v1082 = vrot.slane %v1080, 5
        %v1083 = vsel %vm230, %v1078, %v1082
        %v1085 = vshrl.u32 %v1018, 16
        %v1087 = vrot.slane %v1085, 4
        %v1088 = vshll.u32 %v1018, 16
        %v1090 = vrot.slane %v1088, 5
        %v1091 = vor.u32 %v1087, %v1090
        %v1092 = vrot.slane %v1091, 4
        %v1094 = vshll.u32 %v1019, 16
        %v1096 = vrot.slane %v1094, 5
        %v1097 = vsel %vm230, %v1092, %v1096
        %v1098 = vshrl.u32 %v1019, 16
        %v1100 = vrot.slane %v1098, 4
        %v1101 = vor.u32 %v1100, %v1096
        %v1102 = vrot.slane %v1101, 4
        %v1104 = vshll.u32 %v1020, 16
        %v1106 = vrot.slane %v1104, 5
        %v1107 = vsel %vm230, %v1102, %v1106
        %v1109 = vshrl.u32 %v1021, 16
        %v1111 = vrot.slane %v1109, 4
        %v1112 = vshll.u32 %v1021, 16
        %v1114 = vrot.slane %v1112, 5
        %v1115 = vor.u32 %v1111, %v1114
        %v1116 = vrot.slane %v1115, 4
        %v1118 = vshll.u32 %v1022, 16
        %v1120 = vrot.slane %v1118, 5
        %v1121 = vsel %vm230, %v1116, %v1120
        %v1122 = vshrl.u32 %v1022, 16
        %v1124 = vrot.slane %v1122, 4
        %v1125 = vor.u32 %v1124, %v1120
        %v1126 = vrot.slane %v1125, 4
        %v1128 = vshll.u32 %v1023, 16
        %v1130 = vrot.slane %v1128, 5
        %v1131 = vsel %vm230, %v1126, %v1130
        %v1133 = vshrl.u32 %v1024, 16
        %v1135 = vrot.slane %v1133, 4
        %v1136 = vshll.u32 %v1024, 16
        %v1138 = vrot.slane %v1136, 5
        %v1139 = vor.u32 %v1135, %v1138
        %v1140 = vrot.slane %v1139, 4
        %v1142 = vshll.u32 %v1025, 16
        %v1144 = vrot.slane %v1142, 5
        %v1145 = vsel %vm230, %v1140, %v1144
        %v1146 = vshrl.u32 %v1025, 16
        %v1148 = vrot.slane %v1146, 4
        %v1149 = vor.u32 %v1148, %v1144
        %v1150 = vrot.slane %v1149, 4
        %v1152 = vshll.u32 %v1026, 16
        %v1154 = vrot.slane %v1152, 5
        %v1155 = vsel %vm230, %v1150, %v1154
        %v1157 = vshrl.u32 %v1027, 16
        %v1159 = vrot.slane %v1157, 4
        %v1160 = vshll.u32 %v1027, 16
        %v1162 = vrot.slane %v1160, 5
        %v1163 = vor.u32 %v1159, %v1162
        %v1164 = vrot.slane %v1163, 4
        %v1166 = vshll.u32 %v1028, 16
        %v1168 = vrot.slane %v1166, 5
        %v1169 = vsel %vm230, %v1164, %v1168
        %v1170 = vshrl.u32 %v1028, 16
        %v1172 = vrot.slane %v1170, 4
        %v1173 = vor.u32 %v1172, %v1168
        %v1174 = vrot.slane %v1173, 4
        %v1176 = vshll.u32 %v1029, 16
        %v1178 = vrot.slane %v1176, 5
        %v1179 = vsel %vm230, %v1174, %v1178
        %v1181 = vshrl.u32 %v1030, 16
        %v1183 = vrot.slane %v1181, 4
        %v1184 = vshll.u32 %v1030, 16
        %v1186 = vrot.slane %v1184, 5
        %v1187 = vor.u32 %v1183, %v1186
        %v1188 = vrot.slane %v1187, 4
        %v1190 = vshll.u32 %v1031, 16
        %v1192 = vrot.slane %v1190, 5
        %v1193 = vsel %vm230, %v1188, %v1192
        %v1194 = vshrl.u32 %v1031, 16
        %v1196 = vrot.slane %v1194, 4
        %v1197 = vor.u32 %v1196, %v1192
        %v1198 = vrot.slane %v1197, 4
        %v1200 = vshll.u32 %v1032, 16
        %v1202 = vrot.slane %v1200, 5
        %v1203 = vsel %vm230, %v1198, %v1202
        %v1205 = vshrl.u32 %v1033, 16
        %v1207 = vrot.slane %v1205, 4
        %v1208 = vshll.u32 %v1033, 16
        %v1210 = vrot.slane %v1208, 5
        %v1211 = vor.u32 %v1207, %v1210
        %v1212 = vrot.slane %v1211, 4
        %v1214 = vshll.u32 %v1034, 16
        %v1216 = vrot.slane %v1214, 5
        %v1217 = vsel %vm230, %v1212, %v1216
        %v1218 = vshrl.u32 %v1034, 16
        %v1220 = vrot.slane %v1218, 4
        %v1221 = vor.u32 %v1220, %v1216
        %v1222 = vrot.slane %v1221, 4
        %v1224 = vshll.u32 %v1035, 16
        %v1226 = vrot.slane %v1224, 5
        %v1227 = vsel %vm230, %v1222, %v1226
        %s1228 = scalar_lea.vmem %s1, 32
        %v1229 = vld [vmem:[%s1228] sm:$0xf]
        %v1230 = vld [vmem:[%s1228 + $0x4] sm:$0xf]
        %v1231 = vunpack.c.l.b16 %v1049
        %v1232 = vunpack.c.l.b16 %v1059
        %v1233 = vunpack.c.l.b16 %v1073
        %v1234 = vunpack.c.l.b16 %v1083
        %v1235 = vunpack.c.l.b16 %v1097
        %v1236 = vunpack.c.l.b16 %v1107
        %v1237 = vunpack.c.l.b16 %v1121
        %v1238 = vunpack.c.l.b16 %v1131
        %v1239 = vunpack.c.l.b16 %v1145
        %v1240 = vunpack.c.l.b16 %v1155
        %v1241 = vunpack.c.l.b16 %v1169
        %v1242 = vunpack.c.l.b16 %v1179
        %v1243 = vunpack.c.l.b16 %v1193
        %v1244 = vunpack.c.l.b16 %v1203
        %v1245 = vunpack.c.l.b16 %v1217
        %v1246 = vunpack.c.l.b16 %v1227
        %v1247 = vpack.c.b16 %v1232, %v1231
        %v1248 = vpack.c.b16 %v1234, %v1233
        %v1249 = vpack.c.b16 %v1236, %v1235
        %v1250 = vpack.c.b16 %v1238, %v1237
        %v1251 = vpack.c.b16 %v1240, %v1239
        %v1252 = vpack.c.b16 %v1242, %v1241
        %v1253 = vpack.c.b16 %v1244, %v1243
        %v1254 = vpack.c.b16 %v1246, %v1245
        %v1257 = vunpack.c.l.b16 %v1229
        %v1258 = vunpack.c.l.b16 %v1230
        %v1259 = vpack.c.b16 %v1258, %v1257
        %v1262 = vsel %vm456, %v1247, 0
        %v1265 = vsel %vm456, %v1248, 0
        %v1268 = vsel %vm456, %v1249, 0
        %v1271 = vsel %vm456, %v1250, 0
        %v1274 = vsel %vm456, %v1251, 0
        %v1277 = vsel %vm456, %v1252, 0
        %v1280 = vsel %vm456, %v1253, 0
        %v1283 = vsel %vm456, %v1254, 0
        %1285 = vmatpush.bf16.msra.mxu0 0
        %1286 = vmatpush.bf16.msra.mxu0 0
        %1287 = vmatpush.bf16.msra.mxu0 0
        %1288 = vmatpush.bf16.msra.mxu0 0
        %1289 = vmatpush.bf16.msra.mxu0 0
        %1290 = vmatpush.bf16.msra.mxu0 0
        %1291 = vmatpush.bf16.msra.mxu0 0
        %1292 = vmatpush.bf16.msra.mxu0 %v1259
        %1293 = vmatmul.bf16.gmra.mxu0 %v1262
        %v1294 = vpop.f32.mrf.mxu0
        %v1295 = vadd.f32 0.0, %v1294
        %v1296 = vpop.f32.mrf.mxu0
        %v1297 = vadd.f32 0.0, %v1296
        %1298 = vmatmul.bf16.gmra.mxu0 %v1265
        %v1299 = vpop.f32.mrf.mxu0
        %v1300 = vadd.f32 0.0, %v1299
        %v1301 = vpop.f32.mrf.mxu0
        %v1302 = vadd.f32 0.0, %v1301
        %1303 = vmatmul.bf16.gmra.mxu0 %v1268
        %v1304 = vpop.f32.mrf.mxu0
        %v1305 = vadd.f32 0.0, %v1304
        %v1306 = vpop.f32.mrf.mxu0
        %v1307 = vadd.f32 0.0, %v1306
        %1308 = vmatmul.bf16.gmra.mxu0 %v1271
        %v1309 = vpop.f32.mrf.mxu0
        %v1310 = vadd.f32 0.0, %v1309
        %v1311 = vpop.f32.mrf.mxu0
        %v1312 = vadd.f32 0.0, %v1311
        %1313 = vmatmul.bf16.gmra.mxu0 %v1274
        %v1314 = vpop.f32.mrf.mxu0
        %v1315 = vadd.f32 0.0, %v1314
        %v1316 = vpop.f32.mrf.mxu0
        %v1317 = vadd.f32 0.0, %v1316
        %1318 = vmatmul.bf16.gmra.mxu0 %v1277
        %v1319 = vpop.f32.mrf.mxu0
        %v1320 = vadd.f32 0.0, %v1319
        %v1321 = vpop.f32.mrf.mxu0
        %v1322 = vadd.f32 0.0, %v1321
        %1323 = vmatmul.bf16.gmra.mxu0 %v1280
        %v1324 = vpop.f32.mrf.mxu0
        %v1325 = vadd.f32 0.0, %v1324
        %v1326 = vpop.f32.mrf.mxu0
        %v1327 = vadd.f32 0.0, %v1326
        %1328 = vmatmul.bf16.gmra.mxu0 %v1283
        %v1329 = vpop.f32.mrf.mxu0
        %v1330 = vadd.f32 0.0, %v1329
        %v1331 = vpop.f32.mrf.mxu0
        %v1332 = vadd.f32 0.0, %v1331
        %1333 = vdwg.mxu0
        %v1334 = vadd.f32 %v996, %v1295
        %v1335 = vadd.f32 %v997, %v1297
        %v1336 = vadd.f32 %v998, %v1300
        %v1337 = vadd.f32 %v999, %v1302
        %v1338 = vadd.f32 %v1000, %v1305
        %v1339 = vadd.f32 %v1001, %v1307
        %v1340 = vadd.f32 %v1002, %v1310
        %v1341 = vadd.f32 %v1003, %v1312
        %v1342 = vadd.f32 %v1004, %v1315
        %v1343 = vadd.f32 %v1005, %v1317
        %v1344 = vadd.f32 %v1006, %v1320
        %v1345 = vadd.f32 %v1007, %v1322
        %v1346 = vadd.f32 %v1008, %v1325
        %v1347 = vadd.f32 %v1009, %v1327
        %v1348 = vadd.f32 %v1010, %v1330
        %v1349 = vadd.f32 %v1011, %v1332
        %v1350 = vld [vmem:[%s857] sm:$0xe]
        %v1351 = vld [vmem:[%s857 + $0xc] sm:$0xe]
        %v1352 = vld [vmem:[%s857 + $0x18] sm:$0xe]
        %v1353 = vld [vmem:[%s857 + $0x24] sm:$0xe]
        %v1354 = vld [vmem:[%s857 + $0x30] sm:$0xe]
        %v1355 = vld [vmem:[%s857 + $0x3c] sm:$0xe]
        %v1356 = vld [vmem:[%s857 + $0x48] sm:$0xe]
        %v1357 = vld [vmem:[%s857 + $0x54] sm:$0xe]
        %v1382 = vrot.slane %v1350, 5
        %v1383 = vrot.slane %v1382, 4
        %v1384 = vrot.slane %v1013, 5
        %v1385 = vsel %vm675, %v1383, %v1384
        %v1386 = vrot.slane %v1384, 4
        %v1387 = vrot.slane %v1014, 5
        %v1388 = vsel %vm675, %v1386, %v1387
        %v1389 = vrot.slane %v1351, 5
        %v1390 = vrot.slane %v1389, 4
        %v1391 = vrot.slane %v1016, 5
        %v1392 = vsel %vm675, %v1390, %v1391
        %v1393 = vrot.slane %v1391, 4
        %v1394 = vrot.slane %v1017, 5
        %v1395 = vsel %vm675, %v1393, %v1394
        %v1396 = vrot.slane %v1352, 5
        %v1397 = vrot.slane %v1396, 4
        %v1398 = vrot.slane %v1019, 5
        %v1399 = vsel %vm675, %v1397, %v1398
        %v1400 = vrot.slane %v1398, 4
        %v1401 = vrot.slane %v1020, 5
        %v1402 = vsel %vm675, %v1400, %v1401
        %v1403 = vrot.slane %v1353, 5
        %v1404 = vrot.slane %v1403, 4
        %v1405 = vrot.slane %v1022, 5
        %v1406 = vsel %vm675, %v1404, %v1405
        %v1407 = vrot.slane %v1405, 4
        %v1408 = vrot.slane %v1023, 5
        %v1409 = vsel %vm675, %v1407, %v1408
        %v1410 = vrot.slane %v1354, 5
        %v1411 = vrot.slane %v1410, 4
        %v1412 = vrot.slane %v1025, 5
        %v1413 = vsel %vm675, %v1411, %v1412
        %v1414 = vrot.slane %v1412, 4
        %v1415 = vrot.slane %v1026, 5
        %v1416 = vsel %vm675, %v1414, %v1415
        %v1417 = vrot.slane %v1355, 5
        %v1418 = vrot.slane %v1417, 4
        %v1419 = vrot.slane %v1028, 5
        %v1420 = vsel %vm675, %v1418, %v1419
        %v1421 = vrot.slane %v1419, 4
        %v1422 = vrot.slane %v1029, 5
        %v1423 = vsel %vm675, %v1421, %v1422
        %v1424 = vrot.slane %v1356, 5
        %v1425 = vrot.slane %v1424, 4
        %v1426 = vrot.slane %v1031, 5
        %v1427 = vsel %vm675, %v1425, %v1426
        %v1428 = vrot.slane %v1426, 4
        %v1429 = vrot.slane %v1032, 5
        %v1430 = vsel %vm675, %v1428, %v1429
        %v1431 = vrot.slane %v1357, 5
        %v1432 = vrot.slane %v1431, 4
        %v1433 = vrot.slane %v1034, 5
        %v1434 = vsel %vm675, %v1432, %v1433
        %v1435 = vrot.slane %v1433, 4
        %v1436 = vrot.slane %v1035, 5
        %v1437 = vsel %vm675, %v1435, %v1436
        %s1438 = scalar_lea.vmem %s1, 40
        %v1439 = vld [vmem:[%s1438] sm:$0xf]
        %v1440 = vld [vmem:[%s1438 + $0x4] sm:$0xf]
        %v1441 = vunpack.c.l.b16 %v1385
        %v1442 = vunpack.c.l.b16 %v1388
        %v1443 = vunpack.c.l.b16 %v1392
        %v1444 = vunpack.c.l.b16 %v1395
        %v1445 = vunpack.c.l.b16 %v1399
        %v1446 = vunpack.c.l.b16 %v1402
        %v1447 = vunpack.c.l.b16 %v1406
        %v1448 = vunpack.c.l.b16 %v1409
        %v1449 = vunpack.c.l.b16 %v1413
        %v1450 = vunpack.c.l.b16 %v1416
        %v1451 = vunpack.c.l.b16 %v1420
        %v1452 = vunpack.c.l.b16 %v1423
        %v1453 = vunpack.c.l.b16 %v1427
        %v1454 = vunpack.c.l.b16 %v1430
        %v1455 = vunpack.c.l.b16 %v1434
        %v1456 = vunpack.c.l.b16 %v1437
        %v1457 = vpack.c.b16 %v1442, %v1441
        %v1458 = vpack.c.b16 %v1444, %v1443
        %v1459 = vpack.c.b16 %v1446, %v1445
        %v1460 = vpack.c.b16 %v1448, %v1447
        %v1461 = vpack.c.b16 %v1450, %v1449
        %v1462 = vpack.c.b16 %v1452, %v1451
        %v1463 = vpack.c.b16 %v1454, %v1453
        %v1464 = vpack.c.b16 %v1456, %v1455
        %v1467 = vunpack.c.l.b16 %v1439
        %v1468 = vunpack.c.l.b16 %v1440
        %v1469 = vpack.c.b16 %v1468, %v1467
        %v1472 = vsel %vm456, %v1457, 0
        %v1475 = vsel %vm456, %v1458, 0
        %v1478 = vsel %vm456, %v1459, 0
        %v1481 = vsel %vm456, %v1460, 0
        %v1484 = vsel %vm456, %v1461, 0
        %v1487 = vsel %vm456, %v1462, 0
        %v1490 = vsel %vm456, %v1463, 0
        %v1493 = vsel %vm456, %v1464, 0
        %1495 = vmatpush.bf16.msra.mxu0 0
        %1496 = vmatpush.bf16.msra.mxu0 0
        %1497 = vmatpush.bf16.msra.mxu0 0
        %1498 = vmatpush.bf16.msra.mxu0 0
        %1499 = vmatpush.bf16.msra.mxu0 0
        %1500 = vmatpush.bf16.msra.mxu0 0
        %1501 = vmatpush.bf16.msra.mxu0 0
        %1502 = vmatpush.bf16.msra.mxu0 %v1469
        %1503 = vmatmul.bf16.gmra.mxu0 %v1472
        %v1504 = vpop.f32.mrf.mxu0
        %v1505 = vadd.f32 0.0, %v1504
        %v1506 = vpop.f32.mrf.mxu0
        %v1507 = vadd.f32 0.0, %v1506
        %1508 = vmatmul.bf16.gmra.mxu0 %v1475
        %v1509 = vpop.f32.mrf.mxu0
        %v1510 = vadd.f32 0.0, %v1509
        %v1511 = vpop.f32.mrf.mxu0
        %v1512 = vadd.f32 0.0, %v1511
        %1513 = vmatmul.bf16.gmra.mxu0 %v1478
        %v1514 = vpop.f32.mrf.mxu0
        %v1515 = vadd.f32 0.0, %v1514
        %v1516 = vpop.f32.mrf.mxu0
        %v1517 = vadd.f32 0.0, %v1516
        %1518 = vmatmul.bf16.gmra.mxu0 %v1481
        %v1519 = vpop.f32.mrf.mxu0
        %v1520 = vadd.f32 0.0, %v1519
        %v1521 = vpop.f32.mrf.mxu0
        %v1522 = vadd.f32 0.0, %v1521
        %1523 = vmatmul.bf16.gmra.mxu0 %v1484
        %v1524 = vpop.f32.mrf.mxu0
        %v1525 = vadd.f32 0.0, %v1524
        %v1526 = vpop.f32.mrf.mxu0
        %v1527 = vadd.f32 0.0, %v1526
        %1528 = vmatmul.bf16.gmra.mxu0 %v1487
        %v1529 = vpop.f32.mrf.mxu0
        %v1530 = vadd.f32 0.0, %v1529
        %v1531 = vpop.f32.mrf.mxu0
        %v1532 = vadd.f32 0.0, %v1531
        %1533 = vmatmul.bf16.gmra.mxu0 %v1490
        %v1534 = vpop.f32.mrf.mxu0
        %v1535 = vadd.f32 0.0, %v1534
        %v1536 = vpop.f32.mrf.mxu0
        %v1537 = vadd.f32 0.0, %v1536
        %1538 = vmatmul.bf16.gmra.mxu0 %v1493
        %v1539 = vpop.f32.mrf.mxu0
        %v1540 = vadd.f32 0.0, %v1539
        %v1541 = vpop.f32.mrf.mxu0
        %v1542 = vadd.f32 0.0, %v1541
        %1543 = vdwg.mxu0
        %v1544 = vadd.f32 %v1334, %v1505
        %v1545 = vadd.f32 %v1335, %v1507
        %v1546 = vadd.f32 %v1336, %v1510
        %v1547 = vadd.f32 %v1337, %v1512
        %v1548 = vadd.f32 %v1338, %v1515
        %v1549 = vadd.f32 %v1339, %v1517
        %v1550 = vadd.f32 %v1340, %v1520
        %v1551 = vadd.f32 %v1341, %v1522
        %v1552 = vadd.f32 %v1342, %v1525
        %v1553 = vadd.f32 %v1343, %v1527
        %v1554 = vadd.f32 %v1344, %v1530
        %v1555 = vadd.f32 %v1345, %v1532
        %v1556 = vadd.f32 %v1346, %v1535
        %v1557 = vadd.f32 %v1347, %v1537
        %v1558 = vadd.f32 %v1348, %v1540
        %v1559 = vadd.f32 %v1349, %v1542
        %s1560 = sadd.s32 %s198, 2
        %s1561 = smul.u32 %s1560, 3
        %s1562 = smul.addr %s1561, 4
        %s1563 = scalar_lea.vmem %s195, %s1562
        %v1564 = vld [vmem:[%s1563] sm:$0xf]
        %v1565 = vld [vmem:[%s1563 + $0x4] sm:$0xf]
        %v1566 = vld [vmem:[%s1563 + $0xc] sm:$0xf]
        %v1567 = vld [vmem:[%s1563 + $0x10] sm:$0xf]
        %v1568 = vld [vmem:[%s1563 + $0x18] sm:$0xf]
        %v1569 = vld [vmem:[%s1563 + $0x1c] sm:$0xf]
        %v1570 = vld [vmem:[%s1563 + $0x24] sm:$0xf]
        %v1571 = vld [vmem:[%s1563 + $0x28] sm:$0xf]
        %v1572 = vld [vmem:[%s1563 + $0x30] sm:$0xf]
        %v1573 = vld [vmem:[%s1563 + $0x34] sm:$0xf]
        %v1574 = vld [vmem:[%s1563 + $0x3c] sm:$0xf]
        %v1575 = vld [vmem:[%s1563 + $0x40] sm:$0xf]
        %v1576 = vld [vmem:[%s1563 + $0x48] sm:$0xf]
        %v1577 = vld [vmem:[%s1563 + $0x4c] sm:$0xf]
        %v1578 = vld [vmem:[%s1563 + $0x54] sm:$0xf]
        %v1579 = vld [vmem:[%s1563 + $0x58] sm:$0xf]
        %s1580 = scalar_lea.vmem %s1, 48
        %v1581 = vld [vmem:[%s1580] sm:$0xf]
        %v1582 = vld [vmem:[%s1580 + $0x4] sm:$0xf]
        %v1599 = vunpack.c.l.b16 %v1564
        %v1600 = vunpack.c.l.b16 %v1565
        %v1601 = vunpack.c.l.b16 %v1566
        %v1602 = vunpack.c.l.b16 %v1567
        %v1603 = vunpack.c.l.b16 %v1568
        %v1604 = vunpack.c.l.b16 %v1569
        %v1605 = vunpack.c.l.b16 %v1570
        %v1606 = vunpack.c.l.b16 %v1571
        %v1607 = vunpack.c.l.b16 %v1572
        %v1608 = vunpack.c.l.b16 %v1573
        %v1609 = vunpack.c.l.b16 %v1574
        %v1610 = vunpack.c.l.b16 %v1575
        %v1611 = vunpack.c.l.b16 %v1576
        %v1612 = vunpack.c.l.b16 %v1577
        %v1613 = vunpack.c.l.b16 %v1578
        %v1614 = vunpack.c.l.b16 %v1579
        %v1615 = vpack.c.b16 %v1600, %v1599
        %v1616 = vpack.c.b16 %v1602, %v1601
        %v1617 = vpack.c.b16 %v1604, %v1603
        %v1618 = vpack.c.b16 %v1606, %v1605
        %v1619 = vpack.c.b16 %v1608, %v1607
        %v1620 = vpack.c.b16 %v1610, %v1609
        %v1621 = vpack.c.b16 %v1612, %v1611
        %v1622 = vpack.c.b16 %v1614, %v1613
        %v1625 = vunpack.c.l.b16 %v1581
        %v1626 = vunpack.c.l.b16 %v1582
        %v1627 = vpack.c.b16 %v1626, %v1625
        %v1630 = vsel %vm456, %v1615, 0
        %v1633 = vsel %vm456, %v1616, 0
        %v1636 = vsel %vm456, %v1617, 0
        %v1639 = vsel %vm456, %v1618, 0
        %v1642 = vsel %vm456, %v1619, 0
        %v1645 = vsel %vm456, %v1620, 0
        %v1648 = vsel %vm456, %v1621, 0
        %v1651 = vsel %vm456, %v1622, 0
        %1653 = vmatpush.bf16.msra.mxu0 0
        %1654 = vmatpush.bf16.msra.mxu0 0
        %1655 = vmatpush.bf16.msra.mxu0 0
        %1656 = vmatpush.bf16.msra.mxu0 0
        %1657 = vmatpush.bf16.msra.mxu0 0
        %1658 = vmatpush.bf16.msra.mxu0 0
        %1659 = vmatpush.bf16.msra.mxu0 0
        %1660 = vmatpush.bf16.msra.mxu0 %v1627
        %1661 = vmatmul.bf16.gmra.mxu0 %v1630
        %v1662 = vpop.f32.mrf.mxu0
        %v1663 = vadd.f32 0.0, %v1662
        %v1664 = vpop.f32.mrf.mxu0
        %v1665 = vadd.f32 0.0, %v1664
        %1666 = vmatmul.bf16.gmra.mxu0 %v1633
        %v1667 = vpop.f32.mrf.mxu0
        %v1668 = vadd.f32 0.0, %v1667
        %v1669 = vpop.f32.mrf.mxu0
        %v1670 = vadd.f32 0.0, %v1669
        %1671 = vmatmul.bf16.gmra.mxu0 %v1636
        %v1672 = vpop.f32.mrf.mxu0
        %v1673 = vadd.f32 0.0, %v1672
        %v1674 = vpop.f32.mrf.mxu0
        %v1675 = vadd.f32 0.0, %v1674
        %1676 = vmatmul.bf16.gmra.mxu0 %v1639
        %v1677 = vpop.f32.mrf.mxu0
        %v1678 = vadd.f32 0.0, %v1677
        %v1679 = vpop.f32.mrf.mxu0
        %v1680 = vadd.f32 0.0, %v1679
        %1681 = vmatmul.bf16.gmra.mxu0 %v1642
        %v1682 = vpop.f32.mrf.mxu0
        %v1683 = vadd.f32 0.0, %v1682
        %v1684 = vpop.f32.mrf.mxu0
        %v1685 = vadd.f32 0.0, %v1684
        %1686 = vmatmul.bf16.gmra.mxu0 %v1645
        %v1687 = vpop.f32.mrf.mxu0
        %v1688 = vadd.f32 0.0, %v1687
        %v1689 = vpop.f32.mrf.mxu0
        %v1690 = vadd.f32 0.0, %v1689
        %1691 = vmatmul.bf16.gmra.mxu0 %v1648
        %v1692 = vpop.f32.mrf.mxu0
        %v1693 = vadd.f32 0.0, %v1692
        %v1694 = vpop.f32.mrf.mxu0
        %v1695 = vadd.f32 0.0, %v1694
        %1696 = vmatmul.bf16.gmra.mxu0 %v1651
        %v1697 = vpop.f32.mrf.mxu0
        %v1698 = vadd.f32 0.0, %v1697
        %v1699 = vpop.f32.mrf.mxu0
        %v1700 = vadd.f32 0.0, %v1699
        %1701 = vdwg.mxu0
        %v1702 = vadd.f32 %v1544, %v1663
        %v1703 = vadd.f32 %v1545, %v1665
        %v1704 = vadd.f32 %v1546, %v1668
        %v1705 = vadd.f32 %v1547, %v1670
        %v1706 = vadd.f32 %v1548, %v1673
        %v1707 = vadd.f32 %v1549, %v1675
        %v1708 = vadd.f32 %v1550, %v1678
        %v1709 = vadd.f32 %v1551, %v1680
        %v1710 = vadd.f32 %v1552, %v1683
        %v1711 = vadd.f32 %v1553, %v1685
        %v1712 = vadd.f32 %v1554, %v1688
        %v1713 = vadd.f32 %v1555, %v1690
        %v1714 = vadd.f32 %v1556, %v1693
        %v1715 = vadd.f32 %v1557, %v1695
        %v1716 = vadd.f32 %v1558, %v1698
        %v1717 = vadd.f32 %v1559, %v1700
        %v1718 = vld [vmem:[%s1563] sm:$0xf]
        %v1719 = vld [vmem:[%s1563 + $0x4] sm:$0xf]
        %v1720 = vld [vmem:[%s1563 + $0x8] sm:$0x1]
        %v1721 = vld [vmem:[%s1563 + $0xc] sm:$0xf]
        %v1722 = vld [vmem:[%s1563 + $0x10] sm:$0xf]
        %v1723 = vld [vmem:[%s1563 + $0x14] sm:$0x1]
        %v1724 = vld [vmem:[%s1563 + $0x18] sm:$0xf]
        %v1725 = vld [vmem:[%s1563 + $0x1c] sm:$0xf]
        %v1726 = vld [vmem:[%s1563 + $0x20] sm:$0x1]
        %v1727 = vld [vmem:[%s1563 + $0x24] sm:$0xf]
        %v1728 = vld [vmem:[%s1563 + $0x28] sm:$0xf]
        %v1729 = vld [vmem:[%s1563 + $0x2c] sm:$0x1]
        %v1730 = vld [vmem:[%s1563 + $0x30] sm:$0xf]
        %v1731 = vld [vmem:[%s1563 + $0x34] sm:$0xf]
        %v1732 = vld [vmem:[%s1563 + $0x38] sm:$0x1]
        %v1733 = vld [vmem:[%s1563 + $0x3c] sm:$0xf]
        %v1734 = vld [vmem:[%s1563 + $0x40] sm:$0xf]
        %v1735 = vld [vmem:[%s1563 + $0x44] sm:$0x1]
        %v1736 = vld [vmem:[%s1563 + $0x48] sm:$0xf]
        %v1737 = vld [vmem:[%s1563 + $0x4c] sm:$0xf]
        %v1738 = vld [vmem:[%s1563 + $0x50] sm:$0x1]
        %v1739 = vld [vmem:[%s1563 + $0x54] sm:$0xf]
        %v1740 = vld [vmem:[%s1563 + $0x58] sm:$0xf]
        %v1741 = vld [vmem:[%s1563 + $0x5c] sm:$0x1]
        %v1743 = vshrl.u32 %v1718, 16
        %v1745 = vrot.slane %v1743, 4
        %v1746 = vshll.u32 %v1718, 16
        %v1748 = vrot.slane %v1746, 5
        %v1749 = vor.u32 %v1745, %v1748
        %v1750 = vrot.slane %v1749, 4
        %v1752 = vshll.u32 %v1719, 16
        %v1754 = vrot.slane %v1752, 5
        %v1755 = vsel %vm230, %v1750, %v1754
        %v1756 = vshrl.u32 %v1719, 16
        %v1758 = vrot.slane %v1756, 4
        %v1759 = vor.u32 %v1758, %v1754
        %v1760 = vrot.slane %v1759, 4
        %v1762 = vshll.u32 %v1720, 16
        %v1764 = vrot.slane %v1762, 5
        %v1765 = vsel %vm230, %v1760, %v1764
        %v1767 = vshrl.u32 %v1721, 16
        %v1769 = vrot.slane %v1767, 4
        %v1770 = vshll.u32 %v1721, 16
        %v1772 = vrot.slane %v1770, 5
        %v1773 = vor.u32 %v1769, %v1772
        %v1774 = vrot.slane %v1773, 4
        %v1776 = vshll.u32 %v1722, 16
        %v1778 = vrot.slane %v1776, 5
        %v1779 = vsel %vm230, %v1774, %v1778
        %v1780 = vshrl.u32 %v1722, 16
        %v1782 = vrot.slane %v1780, 4
        %v1783 = vor.u32 %v1782, %v1778
        %v1784 = vrot.slane %v1783, 4
        %v1786 = vshll.u32 %v1723, 16
        %v1788 = vrot.slane %v1786, 5
        %v1789 = vsel %vm230, %v1784, %v1788
        %v1791 = vshrl.u32 %v1724, 16
        %v1793 = vrot.slane %v1791, 4
        %v1794 = vshll.u32 %v1724, 16
        %v1796 = vrot.slane %v1794, 5
        %v1797 = vor.u32 %v1793, %v1796
        %v1798 = vrot.slane %v1797, 4
        %v1800 = vshll.u32 %v1725, 16
        %v1802 = vrot.slane %v1800, 5
        %v1803 = vsel %vm230, %v1798, %v1802
        %v1804 = vshrl.u32 %v1725, 16
        %v1806 = vrot.slane %v1804, 4
        %v1807 = vor.u32 %v1806, %v1802
        %v1808 = vrot.slane %v1807, 4
        %v1810 = vshll.u32 %v1726, 16
        %v1812 = vrot.slane %v1810, 5
        %v1813 = vsel %vm230, %v1808, %v1812
        %v1815 = vshrl.u32 %v1727, 16
        %v1817 = vrot.slane %v1815, 4
        %v1818 = vshll.u32 %v1727, 16
        %v1820 = vrot.slane %v1818, 5
        %v1821 = vor.u32 %v1817, %v1820
        %v1822 = vrot.slane %v1821, 4
        %v1824 = vshll.u32 %v1728, 16
        %v1826 = vrot.slane %v1824, 5
        %v1827 = vsel %vm230, %v1822, %v1826
        %v1828 = vshrl.u32 %v1728, 16
        %v1830 = vrot.slane %v1828, 4
        %v1831 = vor.u32 %v1830, %v1826
        %v1832 = vrot.slane %v1831, 4
        %v1834 = vshll.u32 %v1729, 16
        %v1836 = vrot.slane %v1834, 5
        %v1837 = vsel %vm230, %v1832, %v1836
        %v1839 = vshrl.u32 %v1730, 16
        %v1841 = vrot.slane %v1839, 4
        %v1842 = vshll.u32 %v1730, 16
        %v1844 = vrot.slane %v1842, 5
        %v1845 = vor.u32 %v1841, %v1844
        %v1846 = vrot.slane %v1845, 4
        %v1848 = vshll.u32 %v1731, 16
        %v1850 = vrot.slane %v1848, 5
        %v1851 = vsel %vm230, %v1846, %v1850
        %v1852 = vshrl.u32 %v1731, 16
        %v1854 = vrot.slane %v1852, 4
        %v1855 = vor.u32 %v1854, %v1850
        %v1856 = vrot.slane %v1855, 4
        %v1858 = vshll.u32 %v1732, 16
        %v1860 = vrot.slane %v1858, 5
        %v1861 = vsel %vm230, %v1856, %v1860
        %v1863 = vshrl.u32 %v1733, 16
        %v1865 = vrot.slane %v1863, 4
        %v1866 = vshll.u32 %v1733, 16
        %v1868 = vrot.slane %v1866, 5
        %v1869 = vor.u32 %v1865, %v1868
        %v1870 = vrot.slane %v1869, 4
        %v1872 = vshll.u32 %v1734, 16
        %v1874 = vrot.slane %v1872, 5
        %v1875 = vsel %vm230, %v1870, %v1874
        %v1876 = vshrl.u32 %v1734, 16
        %v1878 = vrot.slane %v1876, 4
        %v1879 = vor.u32 %v1878, %v1874
        %v1880 = vrot.slane %v1879, 4
        %v1882 = vshll.u32 %v1735, 16
        %v1884 = vrot.slane %v1882, 5
        %v1885 = vsel %vm230, %v1880, %v1884
        %v1887 = vshrl.u32 %v1736, 16
        %v1889 = vrot.slane %v1887, 4
        %v1890 = vshll.u32 %v1736, 16
        %v1892 = vrot.slane %v1890, 5
        %v1893 = vor.u32 %v1889, %v1892
        %v1894 = vrot.slane %v1893, 4
        %v1896 = vshll.u32 %v1737, 16
        %v1898 = vrot.slane %v1896, 5
        %v1899 = vsel %vm230, %v1894, %v1898
        %v1900 = vshrl.u32 %v1737, 16
        %v1902 = vrot.slane %v1900, 4
        %v1903 = vor.u32 %v1902, %v1898
        %v1904 = vrot.slane %v1903, 4
        %v1906 = vshll.u32 %v1738, 16
        %v1908 = vrot.slane %v1906, 5
        %v1909 = vsel %vm230, %v1904, %v1908
        %v1911 = vshrl.u32 %v1739, 16
        %v1913 = vrot.slane %v1911, 4
        %v1914 = vshll.u32 %v1739, 16
        %v1916 = vrot.slane %v1914, 5
        %v1917 = vor.u32 %v1913, %v1916
        %v1918 = vrot.slane %v1917, 4
        %v1920 = vshll.u32 %v1740, 16
        %v1922 = vrot.slane %v1920, 5
        %v1923 = vsel %vm230, %v1918, %v1922
        %v1924 = vshrl.u32 %v1740, 16
        %v1926 = vrot.slane %v1924, 4
        %v1927 = vor.u32 %v1926, %v1922
        %v1928 = vrot.slane %v1927, 4
        %v1930 = vshll.u32 %v1741, 16
        %v1932 = vrot.slane %v1930, 5
        %v1933 = vsel %vm230, %v1928, %v1932
        %s1934 = scalar_lea.vmem %s1, 56
        %v1935 = vld [vmem:[%s1934] sm:$0xf]
        %v1936 = vld [vmem:[%s1934 + $0x4] sm:$0xf]
        %v1937 = vunpack.c.l.b16 %v1755
        %v1938 = vunpack.c.l.b16 %v1765
        %v1939 = vunpack.c.l.b16 %v1779
        %v1940 = vunpack.c.l.b16 %v1789
        %v1941 = vunpack.c.l.b16 %v1803
        %v1942 = vunpack.c.l.b16 %v1813
        %v1943 = vunpack.c.l.b16 %v1827
        %v1944 = vunpack.c.l.b16 %v1837
        %v1945 = vunpack.c.l.b16 %v1851
        %v1946 = vunpack.c.l.b16 %v1861
        %v1947 = vunpack.c.l.b16 %v1875
        %v1948 = vunpack.c.l.b16 %v1885
        %v1949 = vunpack.c.l.b16 %v1899
        %v1950 = vunpack.c.l.b16 %v1909
        %v1951 = vunpack.c.l.b16 %v1923
        %v1952 = vunpack.c.l.b16 %v1933
        %v1953 = vpack.c.b16 %v1938, %v1937
        %v1954 = vpack.c.b16 %v1940, %v1939
        %v1955 = vpack.c.b16 %v1942, %v1941
        %v1956 = vpack.c.b16 %v1944, %v1943
        %v1957 = vpack.c.b16 %v1946, %v1945
        %v1958 = vpack.c.b16 %v1948, %v1947
        %v1959 = vpack.c.b16 %v1950, %v1949
        %v1960 = vpack.c.b16 %v1952, %v1951
        %v1963 = vunpack.c.l.b16 %v1935
        %v1964 = vunpack.c.l.b16 %v1936
        %v1965 = vpack.c.b16 %v1964, %v1963
        %v1968 = vsel %vm456, %v1953, 0
        %v1971 = vsel %vm456, %v1954, 0
        %v1974 = vsel %vm456, %v1955, 0
        %v1977 = vsel %vm456, %v1956, 0
        %v1980 = vsel %vm456, %v1957, 0
        %v1983 = vsel %vm456, %v1958, 0
        %v1986 = vsel %vm456, %v1959, 0
        %v1989 = vsel %vm456, %v1960, 0
        %1991 = vmatpush.bf16.msra.mxu0 0
        %1992 = vmatpush.bf16.msra.mxu0 0
        %1993 = vmatpush.bf16.msra.mxu0 0
        %1994 = vmatpush.bf16.msra.mxu0 0
        %1995 = vmatpush.bf16.msra.mxu0 0
        %1996 = vmatpush.bf16.msra.mxu0 0
        %1997 = vmatpush.bf16.msra.mxu0 0
        %1998 = vmatpush.bf16.msra.mxu0 %v1965
        %1999 = vmatmul.bf16.gmra.mxu0 %v1968
        %v2000 = vpop.f32.mrf.mxu0
        %v2001 = vadd.f32 0.0, %v2000
        %v2002 = vpop.f32.mrf.mxu0
        %v2003 = vadd.f32 0.0, %v2002
        %2004 = vmatmul.bf16.gmra.mxu0 %v1971
        %v2005 = vpop.f32.mrf.mxu0
        %v2006 = vadd.f32 0.0, %v2005
        %v2007 = vpop.f32.mrf.mxu0
        %v2008 = vadd.f32 0.0, %v2007
        %2009 = vmatmul.bf16.gmra.mxu0 %v1974
        %v2010 = vpop.f32.mrf.mxu0
        %v2011 = vadd.f32 0.0, %v2010
        %v2012 = vpop.f32.mrf.mxu0
        %v2013 = vadd.f32 0.0, %v2012
        %2014 = vmatmul.bf16.gmra.mxu0 %v1977
        %v2015 = vpop.f32.mrf.mxu0
        %v2016 = vadd.f32 0.0, %v2015
        %v2017 = vpop.f32.mrf.mxu0
        %v2018 = vadd.f32 0.0, %v2017
        %2019 = vmatmul.bf16.gmra.mxu0 %v1980
        %v2020 = vpop.f32.mrf.mxu0
        %v2021 = vadd.f32 0.0, %v2020
        %v2022 = vpop.f32.mrf.mxu0
        %v2023 = vadd.f32 0.0, %v2022
        %2024 = vmatmul.bf16.gmra.mxu0 %v1983
        %v2025 = vpop.f32.mrf.mxu0
        %v2026 = vadd.f32 0.0, %v2025
        %v2027 = vpop.f32.mrf.mxu0
        %v2028 = vadd.f32 0.0, %v2027
        %2029 = vmatmul.bf16.gmra.mxu0 %v1986
        %v2030 = vpop.f32.mrf.mxu0
        %v2031 = vadd.f32 0.0, %v2030
        %v2032 = vpop.f32.mrf.mxu0
        %v2033 = vadd.f32 0.0, %v2032
        %2034 = vmatmul.bf16.gmra.mxu0 %v1989
        %v2035 = vpop.f32.mrf.mxu0
        %v2036 = vadd.f32 0.0, %v2035
        %v2037 = vpop.f32.mrf.mxu0
        %v2038 = vadd.f32 0.0, %v2037
        %2039 = vdwg.mxu0
        %v2040 = vadd.f32 %v1702, %v2001
        %v2041 = vadd.f32 %v1703, %v2003
        %v2042 = vadd.f32 %v1704, %v2006
        %v2043 = vadd.f32 %v1705, %v2008
        %v2044 = vadd.f32 %v1706, %v2011
        %v2045 = vadd.f32 %v1707, %v2013
        %v2046 = vadd.f32 %v1708, %v2016
        %v2047 = vadd.f32 %v1709, %v2018
        %v2048 = vadd.f32 %v1710, %v2021
        %v2049 = vadd.f32 %v1711, %v2023
        %v2050 = vadd.f32 %v1712, %v2026
        %v2051 = vadd.f32 %v1713, %v2028
        %v2052 = vadd.f32 %v1714, %v2031
        %v2053 = vadd.f32 %v1715, %v2033
        %v2054 = vadd.f32 %v1716, %v2036
        %v2055 = vadd.f32 %v1717, %v2038
        %v2056 = vld [vmem:[%s1563] sm:$0xe]
        %v2057 = vld [vmem:[%s1563 + $0xc] sm:$0xe]
        %v2058 = vld [vmem:[%s1563 + $0x18] sm:$0xe]
        %v2059 = vld [vmem:[%s1563 + $0x24] sm:$0xe]
        %v2060 = vld [vmem:[%s1563 + $0x30] sm:$0xe]
        %v2061 = vld [vmem:[%s1563 + $0x3c] sm:$0xe]
        %v2062 = vld [vmem:[%s1563 + $0x48] sm:$0xe]
        %v2063 = vld [vmem:[%s1563 + $0x54] sm:$0xe]
        %v2088 = vrot.slane %v2056, 5
        %v2089 = vrot.slane %v2088, 4
        %v2090 = vrot.slane %v1719, 5
        %v2091 = vsel %vm675, %v2089, %v2090
        %v2092 = vrot.slane %v2090, 4
        %v2093 = vrot.slane %v1720, 5
        %v2094 = vsel %vm675, %v2092, %v2093
        %v2095 = vrot.slane %v2057, 5
        %v2096 = vrot.slane %v2095, 4
        %v2097 = vrot.slane %v1722, 5
        %v2098 = vsel %vm675, %v2096, %v2097
        %v2099 = vrot.slane %v2097, 4
        %v2100 = vrot.slane %v1723, 5
        %v2101 = vsel %vm675, %v2099, %v2100
        %v2102 = vrot.slane %v2058, 5
        %v2103 = vrot.slane %v2102, 4
        %v2104 = vrot.slane %v1725, 5
        %v2105 = vsel %vm675, %v2103, %v2104
        %v2106 = vrot.slane %v2104, 4
        %v2107 = vrot.slane %v1726, 5
        %v2108 = vsel %vm675, %v2106, %v2107
        %v2109 = vrot.slane %v2059, 5
        %v2110 = vrot.slane %v2109, 4
        %v2111 = vrot.slane %v1728, 5
        %v2112 = vsel %vm675, %v2110, %v2111
        %v2113 = vrot.slane %v2111, 4
        %v2114 = vrot.slane %v1729, 5
        %v2115 = vsel %vm675, %v2113, %v2114
        %v2116 = vrot.slane %v2060, 5
        %v2117 = vrot.slane %v2116, 4
        %v2118 = vrot.slane %v1731, 5
        %v2119 = vsel %vm675, %v2117, %v2118
        %v2120 = vrot.slane %v2118, 4
        %v2121 = vrot.slane %v1732, 5
        %v2122 = vsel %vm675, %v2120, %v2121
        %v2123 = vrot.slane %v2061, 5
        %v2124 = vrot.slane %v2123, 4
        %v2125 = vrot.slane %v1734, 5
        %v2126 = vsel %vm675, %v2124, %v2125
        %v2127 = vrot.slane %v2125, 4
        %v2128 = vrot.slane %v1735, 5
        %v2129 = vsel %vm675, %v2127, %v2128
        %v2130 = vrot.slane %v2062, 5
        %v2131 = vrot.slane %v2130, 4
        %v2132 = vrot.slane %v1737, 5
        %v2133 = vsel %vm675, %v2131, %v2132
        %v2134 = vrot.slane %v2132, 4
        %v2135 = vrot.slane %v1738, 5
        %v2136 = vsel %vm675, %v2134, %v2135
        %v2137 = vrot.slane %v2063, 5
        %v2138 = vrot.slane %v2137, 4
        %v2139 = vrot.slane %v1740, 5
        %v2140 = vsel %vm675, %v2138, %v2139
        %v2141 = vrot.slane %v2139, 4
        %v2142 = vrot.slane %v1741, 5
        %v2143 = vsel %vm675, %v2141, %v2142
        %s2144 = scalar_lea.vmem %s1, 64
        %v2145 = vld [vmem:[%s2144] sm:$0xf]
        %v2146 = vld [vmem:[%s2144 + $0x4] sm:$0xf]
        %v2147 = vunpack.c.l.b16 %v2091
        %v2148 = vunpack.c.l.b16 %v2094
        %v2149 = vunpack.c.l.b16 %v2098
        %v2150 = vunpack.c.l.b16 %v2101
        %v2151 = vunpack.c.l.b16 %v2105
        %v2152 = vunpack.c.l.b16 %v2108
        %v2153 = vunpack.c.l.b16 %v2112
        %v2154 = vunpack.c.l.b16 %v2115
        %v2155 = vunpack.c.l.b16 %v2119
        %v2156 = vunpack.c.l.b16 %v2122
        %v2157 = vunpack.c.l.b16 %v2126
        %v2158 = vunpack.c.l.b16 %v2129
        %v2159 = vunpack.c.l.b16 %v2133
        %v2160 = vunpack.c.l.b16 %v2136
        %v2161 = vunpack.c.l.b16 %v2140
        %v2162 = vunpack.c.l.b16 %v2143
        %v2163 = vpack.c.b16 %v2148, %v2147
        %v2164 = vpack.c.b16 %v2150, %v2149
        %v2165 = vpack.c.b16 %v2152, %v2151
        %v2166 = vpack.c.b16 %v2154, %v2153
        %v2167 = vpack.c.b16 %v2156, %v2155
        %v2168 = vpack.c.b16 %v2158, %v2157
        %v2169 = vpack.c.b16 %v2160, %v2159
        %v2170 = vpack.c.b16 %v2162, %v2161
        %v2173 = vunpack.c.l.b16 %v2145
        %v2174 = vunpack.c.l.b16 %v2146
        %v2175 = vpack.c.b16 %v2174, %v2173
        %v2178 = vsel %vm456, %v2163, 0
        %v2181 = vsel %vm456, %v2164, 0
        %v2184 = vsel %vm456, %v2165, 0
        %v2187 = vsel %vm456, %v2166, 0
        %v2190 = vsel %vm456, %v2167, 0
        %v2193 = vsel %vm456, %v2168, 0
        %v2196 = vsel %vm456, %v2169, 0
        %v2199 = vsel %vm456, %v2170, 0
        %2201 = vmatpush.bf16.msra.mxu0 0
        %2202 = vmatpush.bf16.msra.mxu0 0
        %2203 = vmatpush.bf16.msra.mxu0 0
        %2204 = vmatpush.bf16.msra.mxu0 0
        %2205 = vmatpush.bf16.msra.mxu0 0
        %2206 = vmatpush.bf16.msra.mxu0 0
        %2207 = vmatpush.bf16.msra.mxu0 0
        %2208 = vmatpush.bf16.msra.mxu0 %v2175
        %2209 = vmatmul.bf16.gmra.mxu0 %v2178
        %v2210 = vpop.f32.mrf.mxu0
        %v2211 = vadd.f32 0.0, %v2210
        %v2212 = vpop.f32.mrf.mxu0
        %v2213 = vadd.f32 0.0, %v2212
        %2214 = vmatmul.bf16.gmra.mxu0 %v2181
        %v2215 = vpop.f32.mrf.mxu0
        %v2216 = vadd.f32 0.0, %v2215
        %v2217 = vpop.f32.mrf.mxu0
        %v2218 = vadd.f32 0.0, %v2217
        %2219 = vmatmul.bf16.gmra.mxu0 %v2184
        %v2220 = vpop.f32.mrf.mxu0
        %v2221 = vadd.f32 0.0, %v2220
        %v2222 = vpop.f32.mrf.mxu0
        %v2223 = vadd.f32 0.0, %v2222
        %2224 = vmatmul.bf16.gmra.mxu0 %v2187
        %v2225 = vpop.f32.mrf.mxu0
        %v2226 = vadd.f32 0.0, %v2225
        %v2227 = vpop.f32.mrf.mxu0
        %v2228 = vadd.f32 0.0, %v2227
        %2229 = vmatmul.bf16.gmra.mxu0 %v2190
        %v2230 = vpop.f32.mrf.mxu0
        %v2231 = vadd.f32 0.0, %v2230
        %v2232 = vpop.f32.mrf.mxu0
        %v2233 = vadd.f32 0.0, %v2232
        %2234 = vmatmul.bf16.gmra.mxu0 %v2193
        %v2235 = vpop.f32.mrf.mxu0
        %v2236 = vadd.f32 0.0, %v2235
        %v2237 = vpop.f32.mrf.mxu0
        %v2238 = vadd.f32 0.0, %v2237
        %2239 = vmatmul.bf16.gmra.mxu0 %v2196
        %v2240 = vpop.f32.mrf.mxu0
        %v2241 = vadd.f32 0.0, %v2240
        %v2242 = vpop.f32.mrf.mxu0
        %v2243 = vadd.f32 0.0, %v2242
        %2244 = vmatmul.bf16.gmra.mxu0 %v2199
        %v2245 = vpop.f32.mrf.mxu0
        %v2246 = vadd.f32 0.0, %v2245
        %v2247 = vpop.f32.mrf.mxu0
        %v2248 = vadd.f32 0.0, %v2247
        %2249 = vdwg.mxu0
        %v2250 = vadd.f32 %v2040, %v2211
        %v2251 = vadd.f32 %v2041, %v2213
        %v2252 = vadd.f32 %v2042, %v2216
        %v2253 = vadd.f32 %v2043, %v2218
        %v2254 = vadd.f32 %v2044, %v2221
        %v2255 = vadd.f32 %v2045, %v2223
        %v2256 = vadd.f32 %v2046, %v2226
        %v2257 = vadd.f32 %v2047, %v2228
        %v2258 = vadd.f32 %v2048, %v2231
        %v2259 = vadd.f32 %v2049, %v2233
        %v2260 = vadd.f32 %v2050, %v2236
        %v2261 = vadd.f32 %v2051, %v2238
        %v2262 = vadd.f32 %v2052, %v2241
        %v2263 = vadd.f32 %v2053, %v2243
        %v2264 = vadd.f32 %v2054, %v2246
        %v2265 = vadd.f32 %v2055, %v2248
        %v2266 = vpack.c.bf16 %v2250, %v2250
        %v2267 = vpack.c.bf16 %v2251, %v2251
        %v2268 = vpack.c.bf16 %v2252, %v2252
        %v2269 = vpack.c.bf16 %v2253, %v2253
        %v2270 = vpack.c.bf16 %v2254, %v2254
        %v2271 = vpack.c.bf16 %v2255, %v2255
        %v2272 = vpack.c.bf16 %v2256, %v2256
        %v2273 = vpack.c.bf16 %v2257, %v2257
        %v2274 = vpack.c.bf16 %v2258, %v2258
        %v2275 = vpack.c.bf16 %v2259, %v2259
        %v2276 = vpack.c.bf16 %v2260, %v2260
        %v2277 = vpack.c.bf16 %v2261, %v2261
        %v2278 = vpack.c.bf16 %v2262, %v2262
        %v2279 = vpack.c.bf16 %v2263, %v2263
        %v2280 = vpack.c.bf16 %v2264, %v2264
        %v2281 = vpack.c.bf16 %v2265, %v2265
        %2282 = vst [vmem:[%s183] sm:$0xf] %v2266
        %2283 = vst [vmem:[%s183 + $0x4] sm:$0xf] %v2267
        %2284 = vst [vmem:[%s183 + $0x8] sm:$0xf] %v2268
        %2285 = vst [vmem:[%s183 + $0xc] sm:$0xf] %v2269
        %2286 = vst [vmem:[%s183 + $0x10] sm:$0xf] %v2270
        %2287 = vst [vmem:[%s183 + $0x14] sm:$0xf] %v2271
        %2288 = vst [vmem:[%s183 + $0x18] sm:$0xf] %v2272
        %2289 = vst [vmem:[%s183 + $0x1c] sm:$0xf] %v2273
        %2290 = vst [vmem:[%s183 + $0x20] sm:$0xf] %v2274
        %2291 = vst [vmem:[%s183 + $0x24] sm:$0xf] %v2275
        %2292 = vst [vmem:[%s183 + $0x28] sm:$0xf] %v2276
        %2293 = vst [vmem:[%s183 + $0x2c] sm:$0xf] %v2277
        %2294 = vst [vmem:[%s183 + $0x30] sm:$0xf] %v2278
        %2295 = vst [vmem:[%s183 + $0x34] sm:$0xf] %v2279
        %2296 = vst [vmem:[%s183 + $0x38] sm:$0xf] %v2280
        %2297 = vst [vmem:[%s183 + $0x3c] sm:$0xf] %v2281
        %v2298 = vadd.f32 %v2250, %v2251
        %v2299 = vadd.f32 %v2298, %v2252
        %v2300 = vadd.f32 %v2299, %v2253
        %v2301 = vadd.f32 %v2300, %v2254
        %v2302 = vadd.f32 %v2301, %v2255
        %v2303 = vadd.f32 %v2302, %v2256
        %v2304 = vadd.f32 %v2303, %v2257
        %v2305 = vadd.f32 %v2304, %v2258
        %v2306 = vadd.f32 %v2305, %v2259
        %v2307 = vadd.f32 %v2306, %v2260
        %v2308 = vadd.f32 %v2307, %v2261
        %v2309 = vadd.f32 %v2308, %v2262
        %v2310 = vadd.f32 %v2309, %v2263
        %v2311 = vadd.f32 %v2310, %v2264
        %v2312 = vadd.f32 %v2311, %v2265
        %v2313 = vrot.slane %v2312, 4
        %v2314 = vadd.f32 %v2312, %v2313
        %v2315 = vrot.slane %v2314, 2
        %v2316 = vadd.f32 %v2314, %v2315
        %v2317 = vrot.slane %v2316, 1
        %v2318 = vadd.f32 %v2316, %v2317
        %2319 = vst [vmem:[%s190] sm:$0x1] %v2318
        %v2320 = vmul.f32 %v2250, %v2250
        %v2321 = vmul.f32 %v2251, %v2251
        %v2322 = vmul.f32 %v2252, %v2252
        %v2323 = vmul.f32 %v2253, %v2253
        %v2324 = vmul.f32 %v2254, %v2254
        %v2325 = vmul.f32 %v2255, %v2255
        %v2326 = vmul.f32 %v2256, %v2256
        %v2327 = vmul.f32 %v2257, %v2257
        %v2328 = vmul.f32 %v2258, %v2258
        %v2329 = vmul.f32 %v2259, %v2259
        %v2330 = vmul.f32 %v2260, %v2260
        %v2331 = vmul.f32 %v2261, %v2261
        %v2332 = vmul.f32 %v2262, %v2262
        %v2333 = vmul.f32 %v2263, %v2263
        %v2334 = vmul.f32 %v2264, %v2264
        %v2335 = vmul.f32 %v2265, %v2265
        %v2336 = vadd.f32 %v2320, %v2321
        %v2337 = vadd.f32 %v2336, %v2322
        %v2338 = vadd.f32 %v2337, %v2323
        %v2339 = vadd.f32 %v2338, %v2324
        %v2340 = vadd.f32 %v2339, %v2325
        %v2341 = vadd.f32 %v2340, %v2326
        %v2342 = vadd.f32 %v2341, %v2327
        %v2343 = vadd.f32 %v2342, %v2328
        %v2344 = vadd.f32 %v2343, %v2329
        %v2345 = vadd.f32 %v2344, %v2330
        %v2346 = vadd.f32 %v2345, %v2331
        %v2347 = vadd.f32 %v2346, %v2332
        %v2348 = vadd.f32 %v2347, %v2333
        %v2349 = vadd.f32 %v2348, %v2334
        %v2350 = vadd.f32 %v2349, %v2335
        %v2351 = vrot.slane %v2350, 4
        %v2352 = vadd.f32 %v2350, %v2351
        %v2353 = vrot.slane %v2352, 2
        %v2354 = vadd.f32 %v2352, %v2353
        %v2355 = vrot.slane %v2354, 1
        %v2356 = vadd.f32 %v2354, %v2355
        %2357 = vst [vmem:[%s190 + $0x1] sm:$0x1] %v2356
        %s2358 = sand.u32 %s90, 1
        %s2359 = scalar_lea.sflag [#allocation3], %s2358
        %s2360 = sand.u32 %s90, 1
        %s2361 = smul.addr %s2360, 64
        %s2362 = scalar_lea.vmem [#allocation2], %s2361
        %s2363 = sand.u32 %s118, 1
        %s2364 = scalar_lea.sflag [#allocation5], %s2363
        %s2365 = sand.u32 %s118, 1
        %s2366 = smul.addr %s2365, 2
        %s2367 = scalar_lea.vmem [#allocation4], %s2366
        // Predicated region
        $region29: #{tpu_custom_call.1} parent=27 // pred_check
          %p2368 = pneg %p100
        $region30: #{tpu_custom_call.1} parent=27 // pred_check_branch
          %2370 = sbr.rel (%p2368) target = $region32
        $region31: #{tpu_custom_call.1} parent=27 // pred_region
          %s2371 = smul.u32 16, %s26
          %2373 = vsyncadd %s2359, 0
          %s2374 = smul.addr %s25, 32
          %s2375 = sadd.s32 %s2371, %s2374
          %s2376 = smul.addr %s2375, 4
          %s2377 = scalar_lea.hbm %s2, %s2376
          %s2378 = sshll.u32 %s2362, 4
          %s2379 = int_to_ptr.vmem [resolvable:$true] %s2378
          %s2380 = sshll.u32 %s2377, 4
          %s2381 = int_to_ptr.hbm [resolvable:$true] %s2380
          %2386 = dma.vmem_to_hbm [thread:$0]  %s2379, 1024, %s2381, %s2359, 64, 64, 4
        $region32: #{tpu_custom_call.1} parent=27 // pred_fallthru
          _
        // Predicated region
        $region33: #{tpu_custom_call.1} parent=27 // pred_check
          %p2387 = pneg %p128
        $region34: #{tpu_custom_call.1} parent=27 // pred_check_branch
          %2389 = sbr.rel (%p2387) target = $region36
        $region35: #{tpu_custom_call.1} parent=27 // pred_region
          %2391 = vsyncadd %s2364, 0
          %s2392 = smul.addr %s25, 2
          %s2393 = sadd.s32 %s26, %s2392
          %s2394 = smul.addr %s2393, 2
          %s2395 = scalar_lea.hbm %s3, %s2394
          %s2397 = sshll.u32 %s2367, 4
          %s2398 = int_to_ptr.vmem [resolvable:$true] %s2397
          %s2399 = sshll.u32 %s2395, 4
          %s2400 = int_to_ptr.hbm [resolvable:$true] %s2399
          %2402 = dma.vmem_to_hbm [thread:$0]  %s2398, 32, %s2400, %s2364
        $region36: #{tpu_custom_call.1} parent=27 // pred_fallthru
          _
      $region28: #{tpu_custom_call.1} parent=5 // pred_fallthru
        _
      %p2403 = scmp.le.s32.totalorder 2, %s16
      // Predicated region
      $region37: #{tpu_custom_call.1} parent=5 // pred_check
        %p2404 = pneg %p2403
      $region38: #{tpu_custom_call.1} parent=5 // pred_check_branch
        %2406 = sbr.rel (%p2404) target = $region40
      $region39: #{tpu_custom_call.1} parent=5 // pred_region
        %s2407 = ssub.s32 %s16, 2
        // Predicated region
        $region41: #{tpu_custom_call.1} parent=39 // pred_check
          %p2408 = pneg %p106
        $region42: #{tpu_custom_call.1} parent=39 // pred_check_branch
          %2410 = sbr.rel (%p2408) target = $region44
        $region43: #{tpu_custom_call.1} parent=39 // pred_region
          %s2411 = sand.u32 %s91, 1
          %s2412 = scalar_lea.sflag [#allocation3], %s2411
          %s2413 = sand.u32 %s91, 1
          %s2414 = smul.addr %s2413, 64
          %s2415 = scalar_lea.vmem [#allocation2], %s2414
          %2417 = dma.done %s2412, 1024
        $region44: #{tpu_custom_call.1} parent=39 // pred_fallthru
          _
        // Predicated region
        $region45: #{tpu_custom_call.1} parent=39 // pred_check
          %p2418 = pneg %p134
        $region46: #{tpu_custom_call.1} parent=39 // pred_check_branch
          %2420 = sbr.rel (%p2418) target = $region48
        $region47: #{tpu_custom_call.1} parent=39 // pred_region
          %s2421 = sand.u32 %s119, 1
          %s2422 = scalar_lea.sflag [#allocation5], %s2421
          %s2423 = sand.u32 %s119, 1
          %s2424 = smul.addr %s2423, 2
          %s2425 = scalar_lea.vmem [#allocation4], %s2424
          %2427 = dma.done %s2422, 32
        $region48: #{tpu_custom_call.1} parent=39 // pred_fallthru
          _
      $region40: #{tpu_custom_call.1} parent=5 // pred_fallthru
        _
    $region6: #{tpu_custom_call.1} parent=1 // loop_footer
      %s20 = sadd.s32 1, %s16
    $region7: #{tpu_custom_call.1} parent=1 // loop_footer_branch
      %15 = sbr.rel target = $region3
    $region8: #{tpu_custom_call.1} parent=1 // loop_exit
      _
    %2428 = vsyncpa [#allocation3], 1
    %s2429 = scalar_lea.sflag [#allocation3], 1
    %2430 = vsyncpa %s2429, 1
    %2431 = vsyncpa [#allocation5], 1
    %s2432 = scalar_lea.sflag [#allocation5], 1
    %2433 = vsyncpa %s2432, 1

</llo_original>
